<compile_context>
chip_gen: v7x
topology: tpu7x:2x2x1
jax: 0.10.0
libtpu: 0.0.40
codegen_flags: <defaults>
</compile_context>

<pallas_src>
import functools

import jax
import jax.numpy as jnp
from jax.experimental import pallas as pl
from jax.experimental.pallas import tpu as pltpu


_VMEM_SPEC = pl.BlockSpec(memory_space=pltpu.MemorySpace.VMEM)
_NEG_BIG = -1e30      # mask value for non-edges
_NEG_SLOPE = 0.2      # PyG GATConv default negative_slope


# ---------------------------------------------------------------------------
# Fused forward kernel
# ---------------------------------------------------------------------------
def _gat_conv_layer(x, w_stack, att_src, att_dst, bias, adj_mask, place, *,
                    heads, apply_relu):
    """One GATConv layer (all heads batched), traced inside the fused kernel.

    x:        (N, F_in)      activations (already resident in VMEM / vregs)
    w_stack:  (H, F_in, C)   per-head lin weight (PyG (F_in, H*C) reshaped in wrapper)
    att_src:  (H, C)
    att_dst:  (H, C)
    bias:     (1, H*C)
    adj_mask: (N, N) bool    adj_mask[i, j] = True iff edge j -> i (self loops incl.)
    place:    (H, C, H*C)    constant scatter: place[h, c, h*C + c] = 1
    """
    # (1) Head projection, all heads in one batched MXU call: (H,N,F)@(H,F,C)->(H,N,C).
    x_b = jnp.broadcast_to(x[None, :, :], (heads,) + x.shape)
    xw = jnp.einsum('hnf,hfc->hnc', x_b, w_stack,
                    preferred_element_type=jnp.float32)                  # (H, N, C)

    # (2) Attention logits for all heads at once (VPU mul + lane reduce).
    alpha_dst = jnp.sum(xw * att_dst[:, None, :], axis=-1,
                        keepdims=True)                                   # (H, N, 1)
    alpha_src = jnp.sum(xw * att_src[:, None, :], axis=-1)[:, None, :]   # (H, 1, N)

    # e[h, i, j] = LeakyReLU(alpha_dst[i] + alpha_src[j]) for edges j -> i.
    e = alpha_dst + alpha_src                                            # (H, N, N)
    e = jnp.where(e > 0.0, e, _NEG_SLOPE * e)
    e = jnp.where(adj_mask[None, :, :], e, _NEG_BIG)

    # (3) Masked softmax over incoming edges (last axis = source node j).
    #     Non-edges sit at -1e30 and underflow to exactly 0 after exp (self loops
    #     guarantee a finite row max), so no extra `* adj` multiply is needed.
    e_max = jnp.max(e, axis=-1, keepdims=True)
    p = jnp.exp(e - e_max)
    denom = jnp.sum(p, axis=-1, keepdims=True)
    attn = p * pl.reciprocal(denom, approx=True)                         # EUP reciprocal

    # (4) Attention-weighted aggregation, batched over heads (single MXU call).
    agg = jnp.einsum('hij,hjc->hic', attn, xw,
                     preferred_element_type=jnp.float32)                 # (H, N, C)

    # (5) Scatter heads into the concatenated (N, H*C) lane layout with a constant
    #     placement matmul + leading-axis sum (replaces jnp.concatenate over heads).
    placed = jnp.einsum('hnc,hcd->hnd', agg, place,
                        preferred_element_type=jnp.float32)              # (H, N, H*C)
    out = jnp.sum(placed, axis=0) + bias                                 # (N, H*C)
    if apply_relu:
        out = jnp.maximum(out, 0.0)
    return out


def _gat_forward_kernel(x_ref, adj_ref, place_ref, *refs, layer_kinds, heads):
    """Fused forward pass: all GATConv + Linear layers in one kernel, VMEM-resident."""
    out_ref = refs[-1]
    p_refs = refs[:-1]

    x = x_ref[...]
    adj_mask = adj_ref[...] > 0.0     # computed once, shared by every GAT layer
    place = place_ref[...]

    idx = 0
    n_layers = len(layer_kinds)
    for li, kind in enumerate(layer_kinds):               # static Python unroll
        apply_relu = li < n_layers - 1                    # ReLU after all but last layer
        if kind == "gat":
            w_stack = p_refs[idx][...]
            a_src = p_refs[idx + 1][...]
            a_dst = p_refs[idx + 2][...]
            b = p_refs[idx + 3][...]
            idx += 4
            x = _gat_conv_layer(x, w_stack, a_src, a_dst, b, adj_mask, place,
                                heads=heads, apply_relu=apply_relu)
        else:  # "linear"
            w = p_refs[idx][...]
            b = p_refs[idx + 1][...]
            idx += 2
            x = jnp.dot(x, w, preferred_element_type=jnp.float32) + b
            if apply_relu:
                x = jnp.maximum(x, 0.0)
    out_ref[...] = x.astype(out_ref.dtype)


# ---------------------------------------------------------------------------
# Wrapper: one pallas_call for the whole network (everything fits in VMEM)
# ---------------------------------------------------------------------------
def gat_forward(params, x, adj, *, heads, n_hidden):
    n = x.shape[0]

    layer_kinds = []
    flat_args = []
    for p in params:
        layer_kinds.append(p[0])
        if p[0] == "gat":
            _, w, a_s, a_d, b = p
            d_in = w.shape[0]
            # PyG weight (F_in, H*C) -> per-head stack (H, F_in, C); plain-JAX prep.
            w_stack = jnp.transpose(w.reshape(d_in, heads, n_hidden), (1, 0, 2))
            flat_args += [w_stack, a_s, a_d, b]
        else:
            _, w, b = p
            flat_args += [w, b]

    # Constant head-placement tensor (H, C, H*C): place[h, c, h*C + c] = 1.
    lane = jnp.arange(heads * n_hidden)[None, None, :]
    hc = (jnp.arange(heads)[:, None, None] * n_hidden
          + jnp.arange(n_hidden)[None, :, None])
    place = (lane == hc).astype(jnp.float32)

    out_dim = params[-1][1].shape[1]
    kern = functools.partial(_gat_forward_kernel,
                             layer_kinds=tuple(layer_kinds), heads=heads)
    n_inputs = 3 + len(flat_args)
    return pl.pallas_call(
        kern,
        out_shape=jax.ShapeDtypeStruct((n, out_dim), jnp.float32),
        in_specs=[_VMEM_SPEC] * n_inputs,
        out_specs=_VMEM_SPEC,
    )(x, adj, place, *flat_args)


# ---------------------------------------------------------------------------
# Parameters / graph construction (plain JAX glue)
# ---------------------------------------------------------------------------
def init_gat_params(key, in_features, n_hidden, heads, out_channels,
                    n_layers, n_layers_mlp=2):
    params = []
    d_in = in_features
    for _ in range(n_layers):                                             # GATConv layers
        key, k1, k2, k3 = jax.random.split(key, 4)
        params.append((
            "gat",
            jax.random.normal(k1, (d_in, heads * n_hidden), jnp.float32) * 0.2,  # lin W
            jax.random.normal(k2, (heads, n_hidden), jnp.float32) * 0.2,         # att_src
            jax.random.normal(k3, (heads, n_hidden), jnp.float32) * 0.2,         # att_dst
            jnp.zeros((1, heads * n_hidden), jnp.float32),                       # bias
        ))
        d_in = heads * n_hidden
    for _ in range(n_layers_mlp - 1):                                     # hidden Linear
        key, k1, k2 = jax.random.split(key, 3)
        params.append((
            "linear",
            jax.random.normal(k1, (d_in, d_in), jnp.float32) * 0.1,
            jax.random.normal(k2, (1, d_in), jnp.float32) * 0.1,
        ))
    key, k1, k2 = jax.random.split(key, 3)                                # output Linear
    params.append((
        "linear",
        jax.random.normal(k1, (d_in, out_channels), jnp.float32) * 0.1,
        jax.random.normal(k2, (1, out_channels), jnp.float32) * 0.1,
    ))
    return params


def dense_adjacency(edge_index, num_nodes):
    """adj[dst, src] = 1.0, plus self loops (GATConv add_self_loops=True)."""
    src, dst = edge_index[0], edge_index[1]
    adj = jnp.zeros((num_nodes, num_nodes), jnp.float32)
    adj = adj.at[dst, src].set(1.0)
    idx = jnp.arange(num_nodes)
    adj = adj.at[idx, idx].set(1.0)
    return adj


def gat_forward_reference(params, x, adj, *, heads, n_hidden):
    """Pure-JAX reference (exact softmax division) for correctness checking."""
    mask = adj > 0
    n_total = len(params)
    for i, p in enumerate(params):
        if p[0] == "gat":
            _, w, a_s, a_d, b = p
            n = x.shape[0]
            xw = (x @ w).reshape(n, heads, n_hidden)                 # (N, H, C)
            al_dst = jnp.einsum('nhc,hc->nh', xw, a_d)               # (N, H)
            al_src = jnp.einsum('nhc,hc->nh', xw, a_s)               # (N, H)
            e = al_dst[:, :, None] + al_src.T[None, :, :]            # (N, H, N) [dst,h,src]
            e = jnp.where(e > 0, e, _NEG_SLOPE * e)
            e = jnp.where(mask[:, None, :], e, _NEG_BIG)
            attn = jax.nn.softmax(e, axis=-1)
            x = jnp.einsum('ihj,jhc->ihc', attn, xw).reshape(n, heads * n_hidden) + b
        else:
            _, w, b = p
            x = x @ w + b
        if i < n_total - 1:
            x = jnp.maximum(x, 0.0)
    return x


# ---------------------------------------------------------------------------
if __name__ == "__main__":
    N = 32               # nodes
    IN_FEATURES = 8
    N_HIDDEN = 8
    HEADS = 2
    OUT_CHANNELS = 4
    N_LAYERS = 2
    N_LAYERS_MLP = 2

    key = jax.random.PRNGKey(0)
    kx, kp = jax.random.split(key)
    x = jax.random.normal(kx, (N, IN_FEATURES), jnp.float32)

    # Deterministic sparse graph: ring edges + "skip-5" chords (src -> dst).
    base = jnp.arange(N, dtype=jnp.int32)
    src = jnp.concatenate([base, base])
    dst = jnp.concatenate([(base + 1) % N, (base + 5) % N])
    edge_index = jnp.stack([src, dst])                               # (2, E), PyG convention

    adj = dense_adjacency(edge_index, N)
    params = init_gat_params(kp, IN_FEATURES, N_HIDDEN, HEADS,
                             OUT_CHANNELS, N_LAYERS, N_LAYERS_MLP)

    out = gat_forward(params, x, adj, heads=HEADS, n_hidden=N_HIDDEN)
    out = jax.block_until_ready(out)

    assert out.shape == (N, OUT_CHANNELS), out.shape
    assert bool(jnp.all(jnp.isfinite(out)))

    # Loose tolerance: the kernel uses the EUP approximate reciprocal in the softmax.
    ref = gat_forward_reference(params, x, adj, heads=HEADS, n_hidden=N_HIDDEN)
    assert bool(jnp.allclose(out, ref, rtol=2e-2, atol=2e-2)), \
        float(jnp.max(jnp.abs(out - ref)))

    print("KERNEL_OK")
</pallas_src>

<mosaic_0001>
module attributes {stable_mosaic.version = 11 : i64} {
  func.func @_gat_forward_kernel(%arg0: memref<32x8xf32, #tpu.memory_space<vmem>>, %arg1: memref<32x32xf32, #tpu.memory_space<vmem>>, %arg2: memref<2x8x16xf32, #tpu.memory_space<vmem>>, %arg3: memref<2x8x8xf32, #tpu.memory_space<vmem>>, %arg4: memref<2x8xf32, #tpu.memory_space<vmem>>, %arg5: memref<2x8xf32, #tpu.memory_space<vmem>>, %arg6: memref<1x16xf32, #tpu.memory_space<vmem>>, %arg7: memref<2x16x8xf32, #tpu.memory_space<vmem>>, %arg8: memref<2x8xf32, #tpu.memory_space<vmem>>, %arg9: memref<2x8xf32, #tpu.memory_space<vmem>>, %arg10: memref<1x16xf32, #tpu.memory_space<vmem>>, %arg11: memref<16x16xf32, #tpu.memory_space<vmem>>, %arg12: memref<1x16xf32, #tpu.memory_space<vmem>>, %arg13: memref<16x4xf32, #tpu.memory_space<vmem>>, %arg14: memref<1x4xf32, #tpu.memory_space<vmem>>, %arg15: memref<32x4xf32, #tpu.memory_space<vmem>>) attributes {dimension_semantics = [], scalar_prefetch = 0 : i64, scratch_operands = 0 : i64, tpu.core_type = #tpu.core_type<tc>} {
    %c0 = arith.constant 0 : index
    %c0_0 = arith.constant 0 : index
    %0 = vector.load %arg0[%c0, %c0_0] : memref<32x8xf32, #tpu.memory_space<vmem>>, vector<32x8xf32>
    %c0_1 = arith.constant 0 : index
    %c0_2 = arith.constant 0 : index
    %1 = vector.load %arg1[%c0_1, %c0_2] : memref<32x32xf32, #tpu.memory_space<vmem>>, vector<32x32xf32>
    %cst = arith.constant 0.000000e+00 : f32
    %2 = vector.broadcast %cst : f32 to vector<32x32xf32>
    %3 = arith.cmpf ogt, %1, %2 : vector<32x32xf32>
    %c0_3 = arith.constant 0 : index
    %c0_4 = arith.constant 0 : index
    %c0_5 = arith.constant 0 : index
    %4 = vector.load %arg2[%c0_3, %c0_4, %c0_5] : memref<2x8x16xf32, #tpu.memory_space<vmem>>, vector<2x8x16xf32>
    %c0_6 = arith.constant 0 : index
    %c0_7 = arith.constant 0 : index
    %c0_8 = arith.constant 0 : index
    %5 = vector.load %arg3[%c0_6, %c0_7, %c0_8] : memref<2x8x8xf32, #tpu.memory_space<vmem>>, vector<2x8x8xf32>
    %c0_9 = arith.constant 0 : index
    %c0_10 = arith.constant 0 : index
    %6 = vector.load %arg4[%c0_9, %c0_10] : memref<2x8xf32, #tpu.memory_space<vmem>>, vector<2x8xf32>
    %c0_11 = arith.constant 0 : index
    %c0_12 = arith.constant 0 : index
    %7 = vector.load %arg5[%c0_11, %c0_12] : memref<2x8xf32, #tpu.memory_space<vmem>>, vector<2x8xf32>
    %c0_13 = arith.constant 0 : index
    %c0_14 = arith.constant 0 : index
    %8 = vector.load %arg6[%c0_13, %c0_14] : memref<1x16xf32, #tpu.memory_space<vmem>>, vector<1x16xf32>
    %9 = vector.shape_cast %0 : vector<32x8xf32> to vector<1x32x8xf32>
    %10 = vector.shape_cast %9 : vector<1x32x8xf32> to vector<1x32x8xf32>
    %11 = vector.broadcast %10 : vector<1x32x8xf32> to vector<2x32x8xf32>
    "tpu.trace_start"() <{level = 10 : i32, message = "hnf,hfc->hnc"}> : () -> ()
    %cst_15 = arith.constant dense<0.000000e+00> : vector<2x32x8xf32>
    %12 = tpu.matmul %11, %5, %cst_15 {dimension_numbers = #tpu.dot_dimension_numbers<[2], [1], [1], [2], [0, 0, 0, 1, 1, 2], [0], [0]>} : vector<2x32x8xf32>, vector<2x8x8xf32>, vector<2x32x8xf32> -> vector<2x32x8xf32>
    "tpu.trace_stop"() : () -> ()
    %13 = vector.shape_cast %7 : vector<2x8xf32> to vector<2x1x8xf32>
    %14 = vector.broadcast %13 : vector<2x1x8xf32> to vector<2x32x8xf32>
    %15 = arith.mulf %12, %14 : vector<2x32x8xf32>
    %cst_16 = arith.constant dense<0.000000e+00> : vector<2x32xf32>
    %16 = vector.multi_reduction <add>, %15, %cst_16 [2] : vector<2x32x8xf32> to vector<2x32xf32>
    %17 = vector.shape_cast %16 : vector<2x32xf32> to vector<2x32x1xf32>
    %18 = vector.shape_cast %6 : vector<2x8xf32> to vector<2x1x8xf32>
    %19 = vector.broadcast %18 : vector<2x1x8xf32> to vector<2x32x8xf32>
    %20 = arith.mulf %12, %19 : vector<2x32x8xf32>
    %cst_17 = arith.constant dense<0.000000e+00> : vector<2x32xf32>
    %21 = vector.multi_reduction <add>, %20, %cst_17 [2] : vector<2x32x8xf32> to vector<2x32xf32>
    %22 = vector.shape_cast %21 : vector<2x32xf32> to vector<2x1x32xf32>
    %23 = vector.broadcast %17 : vector<2x32x1xf32> to vector<2x32x32xf32>
    %24 = vector.broadcast %22 : vector<2x1x32xf32> to vector<2x32x32xf32>
    %25 = arith.addf %23, %24 : vector<2x32x32xf32>
    %cst_18 = arith.constant 0.000000e+00 : f32
    %26 = vector.broadcast %cst_18 : f32 to vector<2x32x32xf32>
    %27 = arith.cmpf ogt, %25, %26 : vector<2x32x32xf32>
    %cst_19 = arith.constant 2.000000e-01 : f32
    %28 = vector.broadcast %cst_19 : f32 to vector<2x32x32xf32>
    %29 = arith.mulf %28, %25 : vector<2x32x32xf32>
    %30 = arith.select %27, %25, %29 : vector<2x32x32xi1>, vector<2x32x32xf32>
    %31 = vector.shape_cast %3 : vector<32x32xi1> to vector<1x32x32xi1>
    %cst_20 = arith.constant -1.000000e+30 : f32
    %32 = vector.shape_cast %31 : vector<1x32x32xi1> to vector<1x32x32xi1>
    %33 = vector.broadcast %32 : vector<1x32x32xi1> to vector<2x32x32xi1>
    %34 = vector.broadcast %cst_20 : f32 to vector<2x32x32xf32>
    %35 = arith.select %33, %30, %34 : vector<2x32x32xi1>, vector<2x32x32xf32>
    %cst_21 = arith.constant dense<0xFF800000> : vector<2x32xf32>
    %36 = vector.multi_reduction <maximumf>, %35, %cst_21 [2] : vector<2x32x32xf32> to vector<2x32xf32>
    %37 = vector.shape_cast %36 : vector<2x32xf32> to vector<2x32x1xf32>
    %38 = vector.broadcast %37 : vector<2x32x1xf32> to vector<2x32x32xf32>
    %39 = arith.subf %35, %38 : vector<2x32x32xf32>
    %40 = math.exp %39 : vector<2x32x32xf32>
    %cst_22 = arith.constant dense<0.000000e+00> : vector<2x32xf32>
    %41 = vector.multi_reduction <add>, %40, %cst_22 [2] : vector<2x32x32xf32> to vector<2x32xf32>
    %42 = vector.shape_cast %41 : vector<2x32xf32> to vector<2x32x1xf32>
    %43 = tpu.reciprocal %42 {approx = true} : vector<2x32x1xf32> -> vector<2x32x1xf32>
    %44 = vector.broadcast %43 : vector<2x32x1xf32> to vector<2x32x32xf32>
    %45 = arith.mulf %40, %44 : vector<2x32x32xf32>
    "tpu.trace_start"() <{level = 10 : i32, message = "hij,hjc->hic"}> : () -> ()
    %cst_23 = arith.constant dense<0.000000e+00> : vector<2x32x8xf32>
    %46 = tpu.matmul %45, %12, %cst_23 {dimension_numbers = #tpu.dot_dimension_numbers<[2], [1], [1], [2], [0, 0, 0, 1, 1, 2], [0], [0]>} : vector<2x32x32xf32>, vector<2x32x8xf32>, vector<2x32x8xf32> -> vector<2x32x8xf32>
    "tpu.trace_stop"() : () -> ()
    "tpu.trace_start"() <{level = 10 : i32, message = "hnc,hcd->hnd"}> : () -> ()
    %cst_24 = arith.constant dense<0.000000e+00> : vector<2x32x16xf32>
    %47 = tpu.matmul %46, %4, %cst_24 {dimension_numbers = #tpu.dot_dimension_numbers<[2], [1], [1], [2], [0, 0, 0, 1, 1, 2], [0], [0]>} : vector<2x32x8xf32>, vector<2x8x16xf32>, vector<2x32x16xf32> -> vector<2x32x16xf32>
    "tpu.trace_stop"() : () -> ()
    %cst_25 = arith.constant dense<0.000000e+00> : vector<32x16xf32>
    %48 = vector.multi_reduction <add>, %47, %cst_25 [0] : vector<2x32x16xf32> to vector<32x16xf32>
    %49 = vector.broadcast %8 : vector<1x16xf32> to vector<32x16xf32>
    %50 = arith.addf %48, %49 : vector<32x16xf32>
    %cst_26 = arith.constant 0.000000e+00 : f32
    %51 = vector.broadcast %cst_26 : f32 to vector<32x16xf32>
    %52 = arith.maximumf %50, %51 : vector<32x16xf32>
    %c0_27 = arith.constant 0 : index
    %c0_28 = arith.constant 0 : index
    %c0_29 = arith.constant 0 : index
    %53 = vector.load %arg7[%c0_27, %c0_28, %c0_29] : memref<2x16x8xf32, #tpu.memory_space<vmem>>, vector<2x16x8xf32>
    %c0_30 = arith.constant 0 : index
    %c0_31 = arith.constant 0 : index
    %54 = vector.load %arg8[%c0_30, %c0_31] : memref<2x8xf32, #tpu.memory_space<vmem>>, vector<2x8xf32>
    %c0_32 = arith.constant 0 : index
    %c0_33 = arith.constant 0 : index
    %55 = vector.load %arg9[%c0_32, %c0_33] : memref<2x8xf32, #tpu.memory_space<vmem>>, vector<2x8xf32>
    %c0_34 = arith.constant 0 : index
    %c0_35 = arith.constant 0 : index
    %56 = vector.load %arg10[%c0_34, %c0_35] : memref<1x16xf32, #tpu.memory_space<vmem>>, vector<1x16xf32>
    %57 = vector.shape_cast %52 : vector<32x16xf32> to vector<1x32x16xf32>
    %58 = vector.shape_cast %57 : vector<1x32x16xf32> to vector<1x32x16xf32>
    %59 = vector.broadcast %58 : vector<1x32x16xf32> to vector<2x32x16xf32>
    "tpu.trace_start"() <{level = 10 : i32, message = "hnf,hfc->hnc"}> : () -> ()
    %cst_36 = arith.constant dense<0.000000e+00> : vector<2x32x8xf32>
    %60 = tpu.matmul %59, %53, %cst_36 {dimension_numbers = #tpu.dot_dimension_numbers<[2], [1], [1], [2], [0, 0, 0, 1, 1, 2], [0], [0]>} : vector<2x32x16xf32>, vector<2x16x8xf32>, vector<2x32x8xf32> -> vector<2x32x8xf32>
    "tpu.trace_stop"() : () -> ()
    %61 = vector.shape_cast %55 : vector<2x8xf32> to vector<2x1x8xf32>
    %62 = vector.broadcast %61 : vector<2x1x8xf32> to vector<2x32x8xf32>
    %63 = arith.mulf %60, %62 : vector<2x32x8xf32>
    %cst_37 = arith.constant dense<0.000000e+00> : vector<2x32xf32>
    %64 = vector.multi_reduction <add>, %63, %cst_37 [2] : vector<2x32x8xf32> to vector<2x32xf32>
    %65 = vector.shape_cast %64 : vector<2x32xf32> to vector<2x32x1xf32>
    %66 = vector.shape_cast %54 : vector<2x8xf32> to vector<2x1x8xf32>
    %67 = vector.broadcast %66 : vector<2x1x8xf32> to vector<2x32x8xf32>
    %68 = arith.mulf %60, %67 : vector<2x32x8xf32>
    %cst_38 = arith.constant dense<0.000000e+00> : vector<2x32xf32>
    %69 = vector.multi_reduction <add>, %68, %cst_38 [2] : vector<2x32x8xf32> to vector<2x32xf32>
    %70 = vector.shape_cast %69 : vector<2x32xf32> to vector<2x1x32xf32>
    %71 = vector.broadcast %65 : vector<2x32x1xf32> to vector<2x32x32xf32>
    %72 = vector.broadcast %70 : vector<2x1x32xf32> to vector<2x32x32xf32>
    %73 = arith.addf %71, %72 : vector<2x32x32xf32>
    %cst_39 = arith.constant 0.000000e+00 : f32
    %74 = vector.broadcast %cst_39 : f32 to vector<2x32x32xf32>
    %75 = arith.cmpf ogt, %73, %74 : vector<2x32x32xf32>
    %cst_40 = arith.constant 2.000000e-01 : f32
    %76 = vector.broadcast %cst_40 : f32 to vector<2x32x32xf32>
    %77 = arith.mulf %76, %73 : vector<2x32x32xf32>
    %78 = arith.select %75, %73, %77 : vector<2x32x32xi1>, vector<2x32x32xf32>
    %79 = vector.shape_cast %3 : vector<32x32xi1> to vector<1x32x32xi1>
    %cst_41 = arith.constant -1.000000e+30 : f32
    %80 = vector.shape_cast %79 : vector<1x32x32xi1> to vector<1x32x32xi1>
    %81 = vector.broadcast %80 : vector<1x32x32xi1> to vector<2x32x32xi1>
    %82 = vector.broadcast %cst_41 : f32 to vector<2x32x32xf32>
    %83 = arith.select %81, %78, %82 : vector<2x32x32xi1>, vector<2x32x32xf32>
    %cst_42 = arith.constant dense<0xFF800000> : vector<2x32xf32>
    %84 = vector.multi_reduction <maximumf>, %83, %cst_42 [2] : vector<2x32x32xf32> to vector<2x32xf32>
    %85 = vector.shape_cast %84 : vector<2x32xf32> to vector<2x32x1xf32>
    %86 = vector.broadcast %85 : vector<2x32x1xf32> to vector<2x32x32xf32>
    %87 = arith.subf %83, %86 : vector<2x32x32xf32>
    %88 = math.exp %87 : vector<2x32x32xf32>
    %cst_43 = arith.constant dense<0.000000e+00> : vector<2x32xf32>
    %89 = vector.multi_reduction <add>, %88, %cst_43 [2] : vector<2x32x32xf32> to vector<2x32xf32>
    %90 = vector.shape_cast %89 : vector<2x32xf32> to vector<2x32x1xf32>
    %91 = tpu.reciprocal %90 {approx = true} : vector<2x32x1xf32> -> vector<2x32x1xf32>
    %92 = vector.broadcast %91 : vector<2x32x1xf32> to vector<2x32x32xf32>
    %93 = arith.mulf %88, %92 : vector<2x32x32xf32>
    "tpu.trace_start"() <{level = 10 : i32, message = "hij,hjc->hic"}> : () -> ()
    %cst_44 = arith.constant dense<0.000000e+00> : vector<2x32x8xf32>
    %94 = tpu.matmul %93, %60, %cst_44 {dimension_numbers = #tpu.dot_dimension_numbers<[2], [1], [1], [2], [0, 0, 0, 1, 1, 2], [0], [0]>} : vector<2x32x32xf32>, vector<2x32x8xf32>, vector<2x32x8xf32> -> vector<2x32x8xf32>
    "tpu.trace_stop"() : () -> ()
    "tpu.trace_start"() <{level = 10 : i32, message = "hnc,hcd->hnd"}> : () -> ()
    %cst_45 = arith.constant dense<0.000000e+00> : vector<2x32x16xf32>
    %95 = tpu.matmul %94, %4, %cst_45 {dimension_numbers = #tpu.dot_dimension_numbers<[2], [1], [1], [2], [0, 0, 0, 1, 1, 2], [0], [0]>} : vector<2x32x8xf32>, vector<2x8x16xf32>, vector<2x32x16xf32> -> vector<2x32x16xf32>
    "tpu.trace_stop"() : () -> ()
    %cst_46 = arith.constant dense<0.000000e+00> : vector<32x16xf32>
    %96 = vector.multi_reduction <add>, %95, %cst_46 [0] : vector<2x32x16xf32> to vector<32x16xf32>
    %97 = vector.broadcast %56 : vector<1x16xf32> to vector<32x16xf32>
    %98 = arith.addf %96, %97 : vector<32x16xf32>
    %cst_47 = arith.constant 0.000000e+00 : f32
    %99 = vector.broadcast %cst_47 : f32 to vector<32x16xf32>
    %100 = arith.maximumf %98, %99 : vector<32x16xf32>
    %c0_48 = arith.constant 0 : index
    %c0_49 = arith.constant 0 : index
    %101 = vector.load %arg11[%c0_48, %c0_49] : memref<16x16xf32, #tpu.memory_space<vmem>>, vector<16x16xf32>
    %c0_50 = arith.constant 0 : index
    %c0_51 = arith.constant 0 : index
    %102 = vector.load %arg12[%c0_50, %c0_51] : memref<1x16xf32, #tpu.memory_space<vmem>>, vector<1x16xf32>
    %cst_52 = arith.constant dense<0.000000e+00> : vector<32x16xf32>
    %103 = tpu.matmul %100, %101, %cst_52 {dimension_numbers = #tpu.dot_dimension_numbers<[1], [0], [0], [1], [0, 0, 1, 1], [], []>} : vector<32x16xf32>, vector<16x16xf32>, vector<32x16xf32> -> vector<32x16xf32>
    %104 = vector.broadcast %102 : vector<1x16xf32> to vector<32x16xf32>
    %105 = arith.addf %103, %104 : vector<32x16xf32>
    %cst_53 = arith.constant 0.000000e+00 : f32
    %106 = vector.broadcast %cst_53 : f32 to vector<32x16xf32>
    %107 = arith.maximumf %105, %106 : vector<32x16xf32>
    %c0_54 = arith.constant 0 : index
    %c0_55 = arith.constant 0 : index
    %108 = vector.load %arg13[%c0_54, %c0_55] : memref<16x4xf32, #tpu.memory_space<vmem>>, vector<16x4xf32>
    %c0_56 = arith.constant 0 : index
    %c0_57 = arith.constant 0 : index
    %109 = vector.load %arg14[%c0_56, %c0_57] : memref<1x4xf32, #tpu.memory_space<vmem>>, vector<1x4xf32>
    %cst_58 = arith.constant dense<0.000000e+00> : vector<32x4xf32>
    %110 = tpu.matmul %107, %108, %cst_58 {dimension_numbers = #tpu.dot_dimension_numbers<[1], [0], [0], [1], [0, 0, 1, 1], [], []>} : vector<32x16xf32>, vector<16x4xf32>, vector<32x4xf32> -> vector<32x4xf32>
    %111 = vector.broadcast %109 : vector<1x4xf32> to vector<32x4xf32>
    %112 = arith.addf %110, %111 : vector<32x4xf32>
    %c0_59 = arith.constant 0 : index
    %c0_60 = arith.constant 0 : index
    %113 = vector.load %arg15[%c0_59, %c0_60] : memref<32x4xf32, #tpu.memory_space<vmem>>, vector<32x4xf32>
    tpu.vector_store %arg15[%c0_59, %c0_60], %112 {strides = array<i32>} : memref<32x4xf32, #tpu.memory_space<vmem>>, vector<32x4xf32>,
    return
  }
}

</mosaic_0001>

<llo_original>
// kernel: tpu_custom_call.1
$region0: #{tpu_custom_call.1}
  #allocation0 [shape = 'u32[]', space=smem, size = 0x4, offset = 0x4, fixed_abs, tag = 'smem constant byte address 0x4 - core index']
  #allocation1 [shape = 'u32[144,128]{1,0:T(1,128)}', space=vmem, size = 0x12000, scoped, tag = 'internal scratch']
  %s0 = inlined_call_operand.vmem [shape: f32[32,8], index: 0, kind: input, shape index: {}]
  %s1 = inlined_call_operand.vmem [shape: f32[32,32], index: 1, kind: input, shape index: {}]
  %s2 = inlined_call_operand.vmem [shape: f32[2,8,16], index: 2, kind: input, shape index: {}]
  %s3 = inlined_call_operand.vmem [shape: f32[2,8,8], index: 3, kind: input, shape index: {}]
  %s4 = inlined_call_operand.vmem [shape: f32[2,8], index: 4, kind: input, shape index: {}]
  %s5 = inlined_call_operand.vmem [shape: f32[2,8], index: 5, kind: input, shape index: {}]
  %s6 = inlined_call_operand.vmem [shape: f32[1,16], index: 6, kind: input, shape index: {}]
  %s7 = inlined_call_operand.vmem [shape: f32[2,16,8], index: 7, kind: input, shape index: {}]
  %s8 = inlined_call_operand.vmem [shape: f32[2,8], index: 8, kind: input, shape index: {}]
  %s9 = inlined_call_operand.vmem [shape: f32[2,8], index: 9, kind: input, shape index: {}]
  %s10 = inlined_call_operand.vmem [shape: f32[1,16], index: 10, kind: input, shape index: {}]
  %s11 = inlined_call_operand.vmem [shape: f32[16,16], index: 11, kind: input, shape index: {}]
  %s12 = inlined_call_operand.vmem [shape: f32[1,16], index: 12, kind: input, shape index: {}]
  %s13 = inlined_call_operand.vmem [shape: f32[16,4], index: 13, kind: input, shape index: {}]
  %s14 = inlined_call_operand.vmem [shape: f32[1,4], index: 14, kind: input, shape index: {}]
  %s15 = inlined_call_operand.vmem [shape: f32[32,4], index: 15, kind: output, shape index: {}]
  %s16 = sld [smem:[#allocation0]]
  $region70: #{tpu_custom_call.1} parent=0
    _
  %s18 = ssub.s32 1, %s16
  %s19 = scalar_select 0, %s18, %s16
  // Predicated region
  $region2: #{tpu_custom_call.1} parent=0 // pred_check
    _
  $region3: #{tpu_custom_call.1} parent=0 // pred_check_branch
    %21 = sbr.rel (0) target = $region5
  $region4: #{tpu_custom_call.1} parent=0 // pred_region
    _
  $region5: #{tpu_custom_call.1} parent=0 // pred_fallthru
    _
  // Predicated region
  $region6: #{tpu_custom_call.1} parent=0 // pred_check
    _
  $region7: #{tpu_custom_call.1} parent=0 // pred_check_branch
    %23 = sbr.rel (0) target = $region9
  $region8: #{tpu_custom_call.1} parent=0 // pred_region
    _
  $region9: #{tpu_custom_call.1} parent=0 // pred_fallthru
    _
  // Predicated region
  $region10: #{tpu_custom_call.1} parent=0 // pred_check
    _
  $region11: #{tpu_custom_call.1} parent=0 // pred_check_branch
    %25 = sbr.rel (0) target = $region13
  $region12: #{tpu_custom_call.1} parent=0 // pred_region
    _
  $region13: #{tpu_custom_call.1} parent=0 // pred_fallthru
    _
  // Predicated region
  $region14: #{tpu_custom_call.1} parent=0 // pred_check
    _
  $region15: #{tpu_custom_call.1} parent=0 // pred_check_branch
    %27 = sbr.rel (0) target = $region17
  $region16: #{tpu_custom_call.1} parent=0 // pred_region
    _
  $region17: #{tpu_custom_call.1} parent=0 // pred_fallthru
    _
  // Predicated region
  $region18: #{tpu_custom_call.1} parent=0 // pred_check
    _
  $region19: #{tpu_custom_call.1} parent=0 // pred_check_branch
    %29 = sbr.rel (0) target = $region21
  $region20: #{tpu_custom_call.1} parent=0 // pred_region
    _
  $region21: #{tpu_custom_call.1} parent=0 // pred_fallthru
    _
  // Predicated region
  $region22: #{tpu_custom_call.1} parent=0 // pred_check
    _
  $region23: #{tpu_custom_call.1} parent=0 // pred_check_branch
    %31 = sbr.rel (0) target = $region25
  $region24: #{tpu_custom_call.1} parent=0 // pred_region
    _
  $region25: #{tpu_custom_call.1} parent=0 // pred_fallthru
    _
  // Predicated region
  $region26: #{tpu_custom_call.1} parent=0 // pred_check
    _
  $region27: #{tpu_custom_call.1} parent=0 // pred_check_branch
    %33 = sbr.rel (0) target = $region29
  $region28: #{tpu_custom_call.1} parent=0 // pred_region
    _
  $region29: #{tpu_custom_call.1} parent=0 // pred_fallthru
    _
  // Predicated region
  $region30: #{tpu_custom_call.1} parent=0 // pred_check
    _
  $region31: #{tpu_custom_call.1} parent=0 // pred_check_branch
    %35 = sbr.rel (0) target = $region33
  $region32: #{tpu_custom_call.1} parent=0 // pred_region
    _
  $region33: #{tpu_custom_call.1} parent=0 // pred_fallthru
    _
  // Predicated region
  $region34: #{tpu_custom_call.1} parent=0 // pred_check
    _
  $region35: #{tpu_custom_call.1} parent=0 // pred_check_branch
    %37 = sbr.rel (0) target = $region37
  $region36: #{tpu_custom_call.1} parent=0 // pred_region
    _
  $region37: #{tpu_custom_call.1} parent=0 // pred_fallthru
    _
  // Predicated region
  $region38: #{tpu_custom_call.1} parent=0 // pred_check
    _
  $region39: #{tpu_custom_call.1} parent=0 // pred_check_branch
    %39 = sbr.rel (0) target = $region41
  $region40: #{tpu_custom_call.1} parent=0 // pred_region
    _
  $region41: #{tpu_custom_call.1} parent=0 // pred_fallthru
    _
  // Predicated region
  $region42: #{tpu_custom_call.1} parent=0 // pred_check
    _
  $region43: #{tpu_custom_call.1} parent=0 // pred_check_branch
    %41 = sbr.rel (0) target = $region45
  $region44: #{tpu_custom_call.1} parent=0 // pred_region
    _
  $region45: #{tpu_custom_call.1} parent=0 // pred_fallthru
    _
  // Predicated region
  $region46: #{tpu_custom_call.1} parent=0 // pred_check
    _
  $region47: #{tpu_custom_call.1} parent=0 // pred_check_branch
    %43 = sbr.rel (0) target = $region49
  $region48: #{tpu_custom_call.1} parent=0 // pred_region
    _
  $region49: #{tpu_custom_call.1} parent=0 // pred_fallthru
    _
  // Predicated region
  $region50: #{tpu_custom_call.1} parent=0 // pred_check
    _
  $region51: #{tpu_custom_call.1} parent=0 // pred_check_branch
    %45 = sbr.rel (0) target = $region53
  $region52: #{tpu_custom_call.1} parent=0 // pred_region
    _
  $region53: #{tpu_custom_call.1} parent=0 // pred_fallthru
    _
  // Predicated region
  $region54: #{tpu_custom_call.1} parent=0 // pred_check
    _
  $region55: #{tpu_custom_call.1} parent=0 // pred_check_branch
    %47 = sbr.rel (0) target = $region57
  $region56: #{tpu_custom_call.1} parent=0 // pred_region
    _
  $region57: #{tpu_custom_call.1} parent=0 // pred_fallthru
    _
  // Predicated region
  $region58: #{tpu_custom_call.1} parent=0 // pred_check
    _
  $region59: #{tpu_custom_call.1} parent=0 // pred_check_branch
    %49 = sbr.rel (0) target = $region61
  $region60: #{tpu_custom_call.1} parent=0 // pred_region
    _
  $region61: #{tpu_custom_call.1} parent=0 // pred_fallthru
    _
  %v50 = vld [vmem:[%s0] sm:$0xff]
  %v51 = vld [vmem:[%s0 + $0x8] sm:$0xff]
  %v52 = vld [vmem:[%s0 + $0x10] sm:$0xff]
  %v53 = vld [vmem:[%s0 + $0x18] sm:$0xff]
  %v54 = vld [vmem:[%s1] sm:$0xff]
  %v55 = vld [vmem:[%s1 + $0x8] sm:$0xff]
  %v56 = vld [vmem:[%s1 + $0x10] sm:$0xff]
  %v57 = vld [vmem:[%s1 + $0x18] sm:$0xff]
  %vm58 = vcmp.gt.f32.partialorder %v54, 0.0
  %vm59 = vcmp.gt.f32.partialorder %v55, 0.0
  %vm60 = vcmp.gt.f32.partialorder %v56, 0.0
  %vm61 = vcmp.gt.f32.partialorder %v57, 0.0
  %v62 = vld [vmem:[%s2] sm:$0xff]
  %v63 = vld [vmem:[%s2 + $0x8] sm:$0xff]
  %v64 = vld [vmem:[%s3] sm:$0xff]
  %v65 = vld [vmem:[%s3 + $0x8] sm:$0xff]
  %v66 = vld [vmem:[%s4] sm:$0x3]
  %v67 = vld [vmem:[%s5] sm:$0x3]
  %v68 = vld [vmem:[%s6] sm:$0x1]
  %vm69 = vcmask 64512
  %v71 = vsel %vm69, %v50, 0
  %v74 = vsel %vm69, %v51, 0
  %v77 = vsel %vm69, %v52, 0
  %v80 = vsel %vm69, %v53, 0
  %82 = vmatprep.subr.mxu0 0.0
  %83 = vmatpush1.msra.mxu0 %v64
  %84 = vmatprep.subr.mxu0 0.0
  %85 = vmatpush1.msra.mxu0 0.0
  %86 = vmatprep.subr.mxu0 0.0
  %87 = vmatpush1.msra.mxu0 0.0
  %88 = vmatprep.subr.mxu0 0.0
  %89 = vmatpush1.msra.mxu0 0.0
  %90 = vmatprep.subr.mxu0 0.0
  %91 = vmatpush1.msra.mxu0 0.0
  %92 = vmatprep.subr.mxu0 0.0
  %93 = vmatpush1.msra.mxu0 0.0
  %94 = vmatprep.subr.mxu0 0.0
  %95 = vmatpush1.msra.mxu0 0.0
  %96 = vmatprep.subr.mxu0 0.0
  %97 = vmatpush1.msra.mxu0 0.0
  %98 = vmatprep.subr.mxu0 0.0
  %99 = vmatpush1.msra.mxu0 0.0
  %100 = vmatprep.subr.mxu0 0.0
  %101 = vmatpush1.msra.mxu0 0.0
  %102 = vmatprep.subr.mxu0 0.0
  %103 = vmatpush1.msra.mxu0 0.0
  %104 = vmatprep.subr.mxu0 0.0
  %105 = vmatpush1.msra.mxu0 0.0
  %106 = vmatprep.subr.mxu0 0.0
  %107 = vmatpush1.msra.mxu0 0.0
  %108 = vmatprep.subr.mxu0 0.0
  %109 = vmatpush1.msra.mxu0 0.0
  %110 = vmatprep.subr.mxu0 0.0
  %111 = vmatpush1.msra.mxu0 0.0
  %112 = vmatprep.subr.mxu0 0.0
  %113 = vmatpush1.msra.mxu0 0.0
  %114 = vmatprep.subr.mxu0 0.0
  %115 = vmatpush1.msra.mxu0 0.0
  %116 = vmatprep.subr.mxu0 0.0
  %117 = vmatpush1.msra.mxu0 0.0
  %118 = vmatprep.subr.mxu0 0.0
  %119 = vmatpush1.msra.mxu0 0.0
  %120 = vmatprep.subr.mxu0 0.0
  %121 = vmatpush1.msra.mxu0 0.0
  %122 = vmatprep.subr.mxu0 0.0
  %123 = vmatpush1.msra.mxu0 0.0
  %124 = vmatprep.subr.mxu0 0.0
  %125 = vmatpush1.msra.mxu0 0.0
  %126 = vmatprep.subr.mxu0 0.0
  %127 = vmatpush1.msra.mxu0 0.0
  %128 = vmatprep.subr.mxu0 0.0
  %129 = vmatpush1.msra.mxu0 0.0
  %130 = vmatprep.subr.mxu0 0.0
  %131 = vmatpush1.msra.mxu0 0.0
  %132 = vmatprep.subr.mxu0 0.0
  %133 = vmatpush1.msra.mxu0 0.0
  %134 = vmatprep.subr.mxu0 0.0
  %135 = vmatpush1.msra.mxu0 0.0
  %136 = vmatprep.subr.mxu0 0.0
  %137 = vmatpush1.msra.mxu0 0.0
  %138 = vmatprep.subr.mxu0 0.0
  %139 = vmatpush1.msra.mxu0 0.0
  %140 = vmatprep.subr.mxu0 0.0
  %141 = vmatpush1.msra.mxu0 0.0
  %142 = vmatprep.subr.mxu0 0.0
  %143 = vmatpush1.msra.mxu0 0.0
  %144 = vmatprep.subr.mxu0 0.0
  %145 = vmatpush1.msra.mxu0 0.0
  %146 = vmatprep.mubr.f32.mxu0 0.0
  %147 = vmatmul.mubr.f32.gmra.mrb[0].mxu0 %v71
  %v148 = vpop.f32.mrb[0].mxu0
  %v149 = vadd.f32 0.0, %v148
  %v150 = vpop.f32.mrb[0].mxu0
  %151 = vmatprep.mubr.f32.mxu0 0.0
  %152 = vmatmul.mubr.f32.gmra.mrb[0].mxu0 %v74
  %v153 = vpop.f32.mrb[0].mxu0
  %v154 = vadd.f32 0.0, %v153
  %v155 = vpop.f32.mrb[0].mxu0
  %156 = vmatprep.mubr.f32.mxu0 0.0
  %157 = vmatmul.mubr.f32.gmra.mrb[0].mxu0 %v77
  %v158 = vpop.f32.mrb[0].mxu0
  %v159 = vadd.f32 0.0, %v158
  %v160 = vpop.f32.mrb[0].mxu0
  %161 = vmatprep.mubr.f32.mxu0 0.0
  %162 = vmatmul.mubr.f32.gmra.mrb[0].mxu0 %v80
  %v163 = vpop.f32.mrb[0].mxu0
  %v164 = vadd.f32 0.0, %v163
  %v165 = vpop.f32.mrb[0].mxu0
  %166 = vdwg.mxu0
  %167 = vmatprep.subr.mxu0 0.0
  %168 = vmatpush1.msra.mxu0 %v65
  %169 = vmatprep.subr.mxu0 0.0
  %170 = vmatpush1.msra.mxu0 0.0
  %171 = vmatprep.subr.mxu0 0.0
  %172 = vmatpush1.msra.mxu0 0.0
  %173 = vmatprep.subr.mxu0 0.0
  %174 = vmatpush1.msra.mxu0 0.0
  %175 = vmatprep.subr.mxu0 0.0
  %176 = vmatpush1.msra.mxu0 0.0
  %177 = vmatprep.subr.mxu0 0.0
  %178 = vmatpush1.msra.mxu0 0.0
  %179 = vmatprep.subr.mxu0 0.0
  %180 = vmatpush1.msra.mxu0 0.0
  %181 = vmatprep.subr.mxu0 0.0
  %182 = vmatpush1.msra.mxu0 0.0
  %183 = vmatprep.subr.mxu0 0.0
  %184 = vmatpush1.msra.mxu0 0.0
  %185 = vmatprep.subr.mxu0 0.0
  %186 = vmatpush1.msra.mxu0 0.0
  %187 = vmatprep.subr.mxu0 0.0
  %188 = vmatpush1.msra.mxu0 0.0
  %189 = vmatprep.subr.mxu0 0.0
  %190 = vmatpush1.msra.mxu0 0.0
  %191 = vmatprep.subr.mxu0 0.0
  %192 = vmatpush1.msra.mxu0 0.0
  %193 = vmatprep.subr.mxu0 0.0
  %194 = vmatpush1.msra.mxu0 0.0
  %195 = vmatprep.subr.mxu0 0.0
  %196 = vmatpush1.msra.mxu0 0.0
  %197 = vmatprep.subr.mxu0 0.0
  %198 = vmatpush1.msra.mxu0 0.0
  %199 = vmatprep.subr.mxu0 0.0
  %200 = vmatpush1.msra.mxu0 0.0
  %201 = vmatprep.subr.mxu0 0.0
  %202 = vmatpush1.msra.mxu0 0.0
  %203 = vmatprep.subr.mxu0 0.0
  %204 = vmatpush1.msra.mxu0 0.0
  %205 = vmatprep.subr.mxu0 0.0
  %206 = vmatpush1.msra.mxu0 0.0
  %207 = vmatprep.subr.mxu0 0.0
  %208 = vmatpush1.msra.mxu0 0.0
  %209 = vmatprep.subr.mxu0 0.0
  %210 = vmatpush1.msra.mxu0 0.0
  %211 = vmatprep.subr.mxu0 0.0
  %212 = vmatpush1.msra.mxu0 0.0
  %213 = vmatprep.subr.mxu0 0.0
  %214 = vmatpush1.msra.mxu0 0.0
  %215 = vmatprep.subr.mxu0 0.0
  %216 = vmatpush1.msra.mxu0 0.0
  %217 = vmatprep.subr.mxu0 0.0
  %218 = vmatpush1.msra.mxu0 0.0
  %219 = vmatprep.subr.mxu0 0.0
  %220 = vmatpush1.msra.mxu0 0.0
  %221 = vmatprep.subr.mxu0 0.0
  %222 = vmatpush1.msra.mxu0 0.0
  %223 = vmatprep.subr.mxu0 0.0
  %224 = vmatpush1.msra.mxu0 0.0
  %225 = vmatprep.subr.mxu0 0.0
  %226 = vmatpush1.msra.mxu0 0.0
  %227 = vmatprep.subr.mxu0 0.0
  %228 = vmatpush1.msra.mxu0 0.0
  %229 = vmatprep.subr.mxu0 0.0
  %230 = vmatpush1.msra.mxu0 0.0
  %231 = vmatprep.mubr.f32.mxu0 0.0
  %232 = vmatmul.mubr.f32.gmra.mrb[0].mxu0 %v71
  %v233 = vpop.f32.mrb[0].mxu0
  %v234 = vadd.f32 0.0, %v233
  %v235 = vpop.f32.mrb[0].mxu0
  %236 = vmatprep.mubr.f32.mxu0 0.0
  %237 = vmatmul.mubr.f32.gmra.mrb[0].mxu0 %v74
  %v238 = vpop.f32.mrb[0].mxu0
  %v239 = vadd.f32 0.0, %v238
  %v240 = vpop.f32.mrb[0].mxu0
  %241 = vmatprep.mubr.f32.mxu0 0.0
  %242 = vmatmul.mubr.f32.gmra.mrb[0].mxu0 %v77
  %v243 = vpop.f32.mrb[0].mxu0
  %v244 = vadd.f32 0.0, %v243
  %v245 = vpop.f32.mrb[0].mxu0
  %246 = vmatprep.mubr.f32.mxu0 0.0
  %247 = vmatmul.mubr.f32.gmra.mrb[0].mxu0 %v80
  %v248 = vpop.f32.mrb[0].mxu0
  %v249 = vadd.f32 0.0, %v248
  %v250 = vpop.f32.mrb[0].mxu0
  %251 = vdwg.mxu0
  %v254 = vunpack.c.l.s4 1966171168
  %v255 = vunpack.c.0.s8 %v254
  %v256 = vlaneseq
  %v257 = vshrl.u32 %v256, 7
  %v258 = vsub.s32 %v255, %v257
  %v259 = vrot.slane %v67, %v258
  %v260 = vcombine.high %v259, %v259
  %v262 = vunpack.c.l.s4 1966171168
  %v263 = vunpack.c.0.s8 %v262
  %v264 = vlaneseq
  %v265 = vshrl.u32 %v264, 7
  %v266 = vsub.s32 %v263, %v265
  %v267 = vrot.slane %v259, %v266
  %v269 = vunpack.c.l.s4 1966171168
  %v270 = vunpack.c.0.s8 %v269
  %v271 = vlaneseq
  %v272 = vshrl.u32 %v271, 7
  %v273 = vsub.s32 %v270, %v272
  %v274 = vrot.slane %v260, %v273
  %v275 = vlaneseq
  %v276 = vshrl.u32 %v275, 7
  %v277 = vsub.s32 0, %v276
  %v278 = vrot.slane %v267, %v277
  %v279 = vlaneseq
  %v280 = vshrl.u32 %v279, 7
  %v281 = vsub.s32 0, %v280
  %v282 = vrot.slane %v274, %v281
  %v285 = vmul.f32 %v149, %v278
  %v286 = vmul.f32 %v154, %v278
  %v287 = vmul.f32 %v159, %v278
  %v288 = vmul.f32 %v164, %v278
  %v289 = vmul.f32 %v234, %v282
  %v290 = vmul.f32 %v239, %v282
  %v291 = vmul.f32 %v244, %v282
  %v292 = vmul.f32 %v249, %v282
  %v293 = vsel %vm69, %v285, 0.0
  %294 = vadd.xlane.f32.xlu0 %v293
  %v295 = vpop.xlane.xlu0 %294
  %v296 = vsel %vm69, %v286, 0.0
  %297 = vadd.xlane.f32.xlu0 %v296
  %v298 = vpop.xlane.xlu0 %297
  %v299 = vsel %vm69, %v287, 0.0
  %300 = vadd.xlane.f32.xlu0 %v299
  %v301 = vpop.xlane.xlu0 %300
  %v302 = vsel %vm69, %v288, 0.0
  %303 = vadd.xlane.f32.xlu0 %v302
  %v304 = vpop.xlane.xlu0 %303
  %v305 = vsel %vm69, %v289, 0.0
  %306 = vadd.xlane.f32.xlu0 %v305
  %v307 = vpop.xlane.xlu0 %306
  %v308 = vsel %vm69, %v290, 0.0
  %309 = vadd.xlane.f32.xlu0 %v308
  %v310 = vpop.xlane.xlu0 %309
  %v311 = vsel %vm69, %v291, 0.0
  %312 = vadd.xlane.f32.xlu0 %v311
  %v313 = vpop.xlane.xlu0 %312
  %v314 = vsel %vm69, %v292, 0.0
  %315 = vadd.xlane.f32.xlu0 %v314
  %v316 = vpop.xlane.xlu0 %315
  %v319 = vunpack.c.l.s4 1966171168
  %v320 = vunpack.c.0.s8 %v319
  %v321 = vlaneseq
  %v322 = vshrl.u32 %v321, 7
  %v323 = vsub.s32 %v320, %v322
  %v324 = vrot.slane %v66, %v323
  %v325 = vcombine.high %v324, %v324
  %v327 = vunpack.c.l.s4 1966171168
  %v328 = vunpack.c.0.s8 %v327
  %v329 = vlaneseq
  %v330 = vshrl.u32 %v329, 7
  %v331 = vsub.s32 %v328, %v330
  %v332 = vrot.slane %v324, %v331
  %v334 = vunpack.c.l.s4 1966171168
  %v335 = vunpack.c.0.s8 %v334
  %v336 = vlaneseq
  %v337 = vshrl.u32 %v336, 7
  %v338 = vsub.s32 %v335, %v337
  %v339 = vrot.slane %v325, %v338
  %v340 = vlaneseq
  %v341 = vshrl.u32 %v340, 7
  %v342 = vsub.s32 0, %v341
  %v343 = vrot.slane %v332, %v342
  %v344 = vlaneseq
  %v345 = vshrl.u32 %v344, 7
  %v346 = vsub.s32 0, %v345
  %v347 = vrot.slane %v339, %v346
  %v350 = vmul.f32 %v149, %v343
  %v351 = vmul.f32 %v154, %v343
  %v352 = vmul.f32 %v159, %v343
  %v353 = vmul.f32 %v164, %v343
  %v354 = vmul.f32 %v234, %v347
  %v355 = vmul.f32 %v239, %v347
  %v356 = vmul.f32 %v244, %v347
  %v357 = vmul.f32 %v249, %v347
  %v358 = vsel %vm69, %v350, 0.0
  %359 = vadd.xlane.f32.xlu0 %v358
  %v360 = vpop.xlane.xlu0 %359
  %v361 = vsel %vm69, %v351, 0.0
  %362 = vadd.xlane.f32.xlu0 %v361
  %v363 = vpop.xlane.xlu0 %362
  %v364 = vsel %vm69, %v352, 0.0
  %365 = vadd.xlane.f32.xlu0 %v364
  %v366 = vpop.xlane.xlu0 %365
  %v367 = vsel %vm69, %v353, 0.0
  %368 = vadd.xlane.f32.xlu0 %v367
  %v369 = vpop.xlane.xlu0 %368
  %v370 = vsel %vm69, %v354, 0.0
  %371 = vadd.xlane.f32.xlu0 %v370
  %v372 = vpop.xlane.xlu0 %371
  %v373 = vsel %vm69, %v355, 0.0
  %374 = vadd.xlane.f32.xlu0 %v373
  %v375 = vpop.xlane.xlu0 %374
  %v376 = vsel %vm69, %v356, 0.0
  %377 = vadd.xlane.f32.xlu0 %v376
  %v378 = vpop.xlane.xlu0 %377
  %v379 = vsel %vm69, %v357, 0.0
  %380 = vadd.xlane.f32.xlu0 %v379
  %v381 = vpop.xlane.xlu0 %380
  %v390 = vlaneseq
  %v391 = vand.u32 %v390, 127
  %v392 = vlaneseq
  %v393 = vshrl.u32 %v392, 7
  %v394 = vsub.s32 %v391, %v393
  %v395 = vrot.slane %v360, %v394
  %v396 = vadd.s32 %v391, 4294967288
  %v397 = vlaneseq
  %v398 = vshrl.u32 %v397, 7
  %v399 = vsub.s32 %v396, %v398
  %v400 = vrot.slane %v363, %v399
  %vm401 = vcmask 130112
  %v402 = vsel %vm401, %v400, %v395
  %v403 = vadd.s32 %v391, 4294967280
  %v404 = vlaneseq
  %v405 = vshrl.u32 %v404, 7
  %v406 = vsub.s32 %v403, %v405
  %v407 = vrot.slane %v366, %v406
  %vm408 = vcmask 195712
  %v409 = vsel %vm408, %v407, %v402
  %v410 = vadd.s32 %v391, 4294967272
  %v411 = vlaneseq
  %v412 = vshrl.u32 %v411, 7
  %v413 = vsub.s32 %v410, %v412
  %v414 = vrot.slane %v369, %v413
  %vm415 = vcmask 261312
  %v416 = vsel %vm415, %v414, %v409
  %v417 = vlaneseq
  %v418 = vshrl.u32 %v417, 7
  %v419 = vsub.s32 %v391, %v418
  %v420 = vrot.slane %v372, %v419
  %v421 = vlaneseq
  %v422 = vshrl.u32 %v421, 7
  %v423 = vsub.s32 %v396, %v422
  %v424 = vrot.slane %v375, %v423
  %v425 = vsel %vm401, %v424, %v420
  %v426 = vlaneseq
  %v427 = vshrl.u32 %v426, 7
  %v428 = vsub.s32 %v403, %v427
  %v429 = vrot.slane %v378, %v428
  %v430 = vsel %vm408, %v429, %v425
  %v431 = vlaneseq
  %v432 = vshrl.u32 %v431, 7
  %v433 = vsub.s32 %v410, %v432
  %v434 = vrot.slane %v381, %v433
  %v435 = vsel %vm415, %v434, %v430
  %vm436 = vcmask 1042434
  %v437 = vsel %vm436, %v416, %v416
  %vm438 = vcmask 1043459
  %v439 = vsel %vm438, %v416, %v437
  %vm440 = vcmask 1044484
  %v441 = vsel %vm440, %v416, %v439
  %vm442 = vcmask 1045509
  %v443 = vsel %vm442, %v416, %v441
  %vm444 = vcmask 1046534
  %v445 = vsel %vm444, %v416, %v443
  %vm446 = vcmask 1047559
  %v447 = vsel %vm446, %v416, %v445
  %v448 = vsel %vm436, %v435, %v435
  %v449 = vsel %vm438, %v435, %v448
  %v450 = vsel %vm440, %v435, %v449
  %v451 = vsel %vm442, %v435, %v450
  %v452 = vsel %vm444, %v435, %v451
  %v453 = vsel %vm446, %v435, %v452
  %v456 = vadd.f32 %v295, %v447
  %v457 = vadd.f32 %v298, %v447
  %v458 = vadd.f32 %v301, %v447
  %v459 = vadd.f32 %v304, %v447
  %v460 = vadd.f32 %v307, %v453
  %v461 = vadd.f32 %v310, %v453
  %v462 = vadd.f32 %v313, %v453
  %v463 = vadd.f32 %v316, %v453
  %vm464 = vcmp.gt.f32.partialorder %v456, 0.0
  %vm465 = vcmp.gt.f32.partialorder %v457, 0.0
  %vm466 = vcmp.gt.f32.partialorder %v458, 0.0
  %vm467 = vcmp.gt.f32.partialorder %v459, 0.0
  %vm468 = vcmp.gt.f32.partialorder %v460, 0.0
  %vm469 = vcmp.gt.f32.partialorder %v461, 0.0
  %vm470 = vcmp.gt.f32.partialorder %v462, 0.0
  %vm471 = vcmp.gt.f32.partialorder %v463, 0.0
  %v472 = vmul.f32 %v456, 0.2
  %v473 = vmul.f32 %v457, 0.2
  %v474 = vmul.f32 %v458, 0.2
  %v475 = vmul.f32 %v459, 0.2
  %v476 = vmul.f32 %v460, 0.2
  %v477 = vmul.f32 %v461, 0.2
  %v478 = vmul.f32 %v462, 0.2
  %v479 = vmul.f32 %v463, 0.2
  %v480 = vsel %vm464, %v456, %v472
  %v481 = vsel %vm465, %v457, %v473
  %v482 = vsel %vm466, %v458, %v474
  %v483 = vsel %vm467, %v459, %v475
  %v484 = vsel %vm468, %v460, %v476
  %v485 = vsel %vm469, %v461, %v477
  %v486 = vsel %vm470, %v462, %v478
  %v487 = vsel %vm471, %v463, %v479
  %v488 = vsel %vm58, 1, 0
  %v489 = vsel %vm59, 1, 0
  %v490 = vsel %vm60, 1, 0
  %v491 = vsel %vm61, 1, 0
  %vm492 = vcmp.eq.s32.totalorder %v488, 1
  %vm493 = vcmp.eq.s32.totalorder %v489, 1
  %vm494 = vcmp.eq.s32.totalorder %v490, 1
  %vm495 = vcmp.eq.s32.totalorder %v491, 1
  %v496 = vsel %vm492, %v480, -1e+30
  %v497 = vsel %vm493, %v481, -1e+30
  %v498 = vsel %vm494, %v482, -1e+30
  %v499 = vsel %vm495, %v483, -1e+30
  %v500 = vsel %vm492, %v484, -1e+30
  %v501 = vsel %vm493, %v485, -1e+30
  %v502 = vsel %vm494, %v486, -1e+30
  %v503 = vsel %vm495, %v487, -1e+30
  %vm504 = vcmask 261120
  %v505 = vsel %vm504, %v496, -inf
  %506 = vmax.xlane.f32.xlu0 %v505
  %v507 = vpop.xlane.xlu0 %506
  %v508 = vsel %vm504, %v497, -inf
  %509 = vmax.xlane.f32.xlu0 %v508
  %v510 = vpop.xlane.xlu0 %509
  %v511 = vsel %vm504, %v498, -inf
  %512 = vmax.xlane.f32.xlu0 %v511
  %v513 = vpop.xlane.xlu0 %512
  %v514 = vsel %vm504, %v499, -inf
  %515 = vmax.xlane.f32.xlu0 %v514
  %v516 = vpop.xlane.xlu0 %515
  %v517 = vsel %vm504, %v500, -inf
  %518 = vmax.xlane.f32.xlu0 %v517
  %v519 = vpop.xlane.xlu0 %518
  %v520 = vsel %vm504, %v501, -inf
  %521 = vmax.xlane.f32.xlu0 %v520
  %v522 = vpop.xlane.xlu0 %521
  %v523 = vsel %vm504, %v502, -inf
  %524 = vmax.xlane.f32.xlu0 %v523
  %v525 = vpop.xlane.xlu0 %524
  %v526 = vsel %vm504, %v503, -inf
  %527 = vmax.xlane.f32.xlu0 %v526
  %v528 = vpop.xlane.xlu0 %527
  %v529 = vsub.f32 %v496, %v507
  %v530 = vsub.f32 %v497, %v510
  %v531 = vsub.f32 %v498, %v513
  %v532 = vsub.f32 %v499, %v516
  %v533 = vsub.f32 %v500, %v519
  %v534 = vsub.f32 %v501, %v522
  %v535 = vsub.f32 %v502, %v525
  %v536 = vsub.f32 %v503, %v528
  %v537 = vmul.f32 %v529, 1.442695
  %v538 = vpow.pop %v537
  %v539 = vmul.f32 %v530, 1.442695
  %v540 = vpow.pop %v539
  %v541 = vmul.f32 %v531, 1.442695
  %v542 = vpow.pop %v541
  %v543 = vmul.f32 %v532, 1.442695
  %v544 = vpow.pop %v543
  %v545 = vmul.f32 %v533, 1.442695
  %v546 = vpow.pop %v545
  %v547 = vmul.f32 %v534, 1.442695
  %v548 = vpow.pop %v547
  %v549 = vmul.f32 %v535, 1.442695
  %v550 = vpow.pop %v549
  %v551 = vmul.f32 %v536, 1.442695
  %v552 = vpow.pop %v551
  %v553 = vsel %vm504, %v538, 0.0
  %554 = vadd.xlane.f32.xlu0 %v553
  %v555 = vpop.xlane.xlu0 %554
  %v556 = vsel %vm504, %v540, 0.0
  %557 = vadd.xlane.f32.xlu0 %v556
  %v558 = vpop.xlane.xlu0 %557
  %v559 = vsel %vm504, %v542, 0.0
  %560 = vadd.xlane.f32.xlu0 %v559
  %v561 = vpop.xlane.xlu0 %560
  %v562 = vsel %vm504, %v544, 0.0
  %563 = vadd.xlane.f32.xlu0 %v562
  %v564 = vpop.xlane.xlu0 %563
  %v565 = vsel %vm504, %v546, 0.0
  %566 = vadd.xlane.f32.xlu0 %v565
  %v567 = vpop.xlane.xlu0 %566
  %v568 = vsel %vm504, %v548, 0.0
  %569 = vadd.xlane.f32.xlu0 %v568
  %v570 = vpop.xlane.xlu0 %569
  %v571 = vsel %vm504, %v550, 0.0
  %572 = vadd.xlane.f32.xlu0 %v571
  %v573 = vpop.xlane.xlu0 %572
  %v574 = vsel %vm504, %v552, 0.0
  %575 = vadd.xlane.f32.xlu0 %v574
  %v576 = vpop.xlane.xlu0 %575
  %v577 = vrcp.pop %v555
  %v578 = vrcp.pop %v558
  %v579 = vrcp.pop %v561
  %v580 = vrcp.pop %v564
  %v581 = vrcp.pop %v567
  %v582 = vrcp.pop %v570
  %v583 = vrcp.pop %v573
  %v584 = vrcp.pop %v576
  %v585 = vmul.f32 %v538, %v577
  %v586 = vmul.f32 %v540, %v578
  %v587 = vmul.f32 %v542, %v579
  %v588 = vmul.f32 %v544, %v580
  %v589 = vmul.f32 %v546, %v581
  %v590 = vmul.f32 %v548, %v582
  %v591 = vmul.f32 %v550, %v583
  %v592 = vmul.f32 %v552, %v584
  %v594 = vsel %vm504, %v585, 0
  %v597 = vsel %vm504, %v586, 0
  %v600 = vsel %vm504, %v587, 0
  %v603 = vsel %vm504, %v588, 0
  %605 = vmatprep.subr.mxu0 0.0
  %606 = vmatpush1.msra.mxu0 %v149
  %607 = vmatprep.subr.mxu0 0.0
  %608 = vmatpush1.msra.mxu0 %v154
  %609 = vmatprep.subr.mxu0 0.0
  %610 = vmatpush1.msra.mxu0 %v159
  %611 = vmatprep.subr.mxu0 0.0
  %612 = vmatpush1.msra.mxu0 %v164
  %613 = vmatprep.subr.mxu0 0.0
  %614 = vmatpush1.msra.mxu0 0.0
  %615 = vmatprep.subr.mxu0 0.0
  %616 = vmatpush1.msra.mxu0 0.0
  %617 = vmatprep.subr.mxu0 0.0
  %618 = vmatpush1.msra.mxu0 0.0
  %619 = vmatprep.subr.mxu0 0.0
  %620 = vmatpush1.msra.mxu0 0.0
  %621 = vmatprep.subr.mxu0 0.0
  %622 = vmatpush1.msra.mxu0 0.0
  %623 = vmatprep.subr.mxu0 0.0
  %624 = vmatpush1.msra.mxu0 0.0
  %625 = vmatprep.subr.mxu0 0.0
  %626 = vmatpush1.msra.mxu0 0.0
  %627 = vmatprep.subr.mxu0 0.0
  %628 = vmatpush1.msra.mxu0 0.0
  %629 = vmatprep.subr.mxu0 0.0
  %630 = vmatpush1.msra.mxu0 0.0
  %631 = vmatprep.subr.mxu0 0.0
  %632 = vmatpush1.msra.mxu0 0.0
  %633 = vmatprep.subr.mxu0 0.0
  %634 = vmatpush1.msra.mxu0 0.0
  %635 = vmatprep.subr.mxu0 0.0
  %636 = vmatpush1.msra.mxu0 0.0
  %637 = vmatprep.subr.mxu0 0.0
  %638 = vmatpush1.msra.mxu0 0.0
  %639 = vmatprep.subr.mxu0 0.0
  %640 = vmatpush1.msra.mxu0 0.0
  %641 = vmatprep.subr.mxu0 0.0
  %642 = vmatpush1.msra.mxu0 0.0
  %643 = vmatprep.subr.mxu0 0.0
  %644 = vmatpush1.msra.mxu0 0.0
  %645 = vmatprep.subr.mxu0 0.0
  %646 = vmatpush1.msra.mxu0 0.0
  %647 = vmatprep.subr.mxu0 0.0
  %648 = vmatpush1.msra.mxu0 0.0
  %649 = vmatprep.subr.mxu0 0.0
  %650 = vmatpush1.msra.mxu0 0.0
  %651 = vmatprep.subr.mxu0 0.0
  %652 = vmatpush1.msra.mxu0 0.0
  %653 = vmatprep.subr.mxu0 0.0
  %654 = vmatpush1.msra.mxu0 0.0
  %655 = vmatprep.subr.mxu0 0.0
  %656 = vmatpush1.msra.mxu0 0.0
  %657 = vmatprep.subr.mxu0 0.0
  %658 = vmatpush1.msra.mxu0 0.0
  %659 = vmatprep.subr.mxu0 0.0
  %660 = vmatpush1.msra.mxu0 0.0
  %661 = vmatprep.subr.mxu0 0.0
  %662 = vmatpush1.msra.mxu0 0.0
  %663 = vmatprep.subr.mxu0 0.0
  %664 = vmatpush1.msra.mxu0 0.0
  %665 = vmatprep.subr.mxu0 0.0
  %666 = vmatpush1.msra.mxu0 0.0
  %667 = vmatprep.subr.mxu0 0.0
  %668 = vmatpush1.msra.mxu0 0.0
  %669 = vmatprep.mubr.f32.mxu0 0.0
  %670 = vmatmul.mubr.f32.gmra.mrb[0].mxu0 %v594
  %v671 = vpop.f32.mrb[0].mxu0
  %v672 = vadd.f32 0.0, %v671
  %v673 = vpop.f32.mrb[0].mxu0
  %674 = vmatprep.mubr.f32.mxu0 0.0
  %675 = vmatmul.mubr.f32.gmra.mrb[0].mxu0 %v597
  %v676 = vpop.f32.mrb[0].mxu0
  %v677 = vadd.f32 0.0, %v676
  %v678 = vpop.f32.mrb[0].mxu0
  %679 = vmatprep.mubr.f32.mxu0 0.0
  %680 = vmatmul.mubr.f32.gmra.mrb[0].mxu0 %v600
  %v681 = vpop.f32.mrb[0].mxu0
  %v682 = vadd.f32 0.0, %v681
  %v683 = vpop.f32.mrb[0].mxu0
  %684 = vmatprep.mubr.f32.mxu0 0.0
  %685 = vmatmul.mubr.f32.gmra.mrb[0].mxu0 %v603
  %v686 = vpop.f32.mrb[0].mxu0
  %v687 = vadd.f32 0.0, %v686
  %v688 = vpop.f32.mrb[0].mxu0
  %689 = vdwg.mxu0
  %v691 = vsel %vm504, %v589, 0
  %v694 = vsel %vm504, %v590, 0
  %v697 = vsel %vm504, %v591, 0
  %v700 = vsel %vm504, %v592, 0
  %702 = vmatprep.subr.mxu0 0.0
  %703 = vmatpush1.msra.mxu0 %v234
  %704 = vmatprep.subr.mxu0 0.0
  %705 = vmatpush1.msra.mxu0 %v239
  %706 = vmatprep.subr.mxu0 0.0
  %707 = vmatpush1.msra.mxu0 %v244
  %708 = vmatprep.subr.mxu0 0.0
  %709 = vmatpush1.msra.mxu0 %v249
  %710 = vmatprep.subr.mxu0 0.0
  %711 = vmatpush1.msra.mxu0 0.0
  %712 = vmatprep.subr.mxu0 0.0
  %713 = vmatpush1.msra.mxu0 0.0
  %714 = vmatprep.subr.mxu0 0.0
  %715 = vmatpush1.msra.mxu0 0.0
  %716 = vmatprep.subr.mxu0 0.0
  %717 = vmatpush1.msra.mxu0 0.0
  %718 = vmatprep.subr.mxu0 0.0
  %719 = vmatpush1.msra.mxu0 0.0
  %720 = vmatprep.subr.mxu0 0.0
  %721 = vmatpush1.msra.mxu0 0.0
  %722 = vmatprep.subr.mxu0 0.0
  %723 = vmatpush1.msra.mxu0 0.0
  %724 = vmatprep.subr.mxu0 0.0
  %725 = vmatpush1.msra.mxu0 0.0
  %726 = vmatprep.subr.mxu0 0.0
  %727 = vmatpush1.msra.mxu0 0.0
  %728 = vmatprep.subr.mxu0 0.0
  %729 = vmatpush1.msra.mxu0 0.0
  %730 = vmatprep.subr.mxu0 0.0
  %731 = vmatpush1.msra.mxu0 0.0
  %732 = vmatprep.subr.mxu0 0.0
  %733 = vmatpush1.msra.mxu0 0.0
  %734 = vmatprep.subr.mxu0 0.0
  %735 = vmatpush1.msra.mxu0 0.0
  %736 = vmatprep.subr.mxu0 0.0
  %737 = vmatpush1.msra.mxu0 0.0
  %738 = vmatprep.subr.mxu0 0.0
  %739 = vmatpush1.msra.mxu0 0.0
  %740 = vmatprep.subr.mxu0 0.0
  %741 = vmatpush1.msra.mxu0 0.0
  %742 = vmatprep.subr.mxu0 0.0
  %743 = vmatpush1.msra.mxu0 0.0
  %744 = vmatprep.subr.mxu0 0.0
  %745 = vmatpush1.msra.mxu0 0.0
  %746 = vmatprep.subr.mxu0 0.0
  %747 = vmatpush1.msra.mxu0 0.0
  %748 = vmatprep.subr.mxu0 0.0
  %749 = vmatpush1.msra.mxu0 0.0
  %750 = vmatprep.subr.mxu0 0.0
  %751 = vmatpush1.msra.mxu0 0.0
  %752 = vmatprep.subr.mxu0 0.0
  %753 = vmatpush1.msra.mxu0 0.0
  %754 = vmatprep.subr.mxu0 0.0
  %755 = vmatpush1.msra.mxu0 0.0
  %756 = vmatprep.subr.mxu0 0.0
  %757 = vmatpush1.msra.mxu0 0.0
  %758 = vmatprep.subr.mxu0 0.0
  %759 = vmatpush1.msra.mxu0 0.0
  %760 = vmatprep.subr.mxu0 0.0
  %761 = vmatpush1.msra.mxu0 0.0
  %762 = vmatprep.subr.mxu0 0.0
  %763 = vmatpush1.msra.mxu0 0.0
  %764 = vmatprep.subr.mxu0 0.0
  %765 = vmatpush1.msra.mxu0 0.0
  %766 = vmatprep.mubr.f32.mxu0 0.0
  %767 = vmatmul.mubr.f32.gmra.mrb[0].mxu0 %v691
  %v768 = vpop.f32.mrb[0].mxu0
  %v769 = vadd.f32 0.0, %v768
  %v770 = vpop.f32.mrb[0].mxu0
  %771 = vmatprep.mubr.f32.mxu0 0.0
  %772 = vmatmul.mubr.f32.gmra.mrb[0].mxu0 %v694
  %v773 = vpop.f32.mrb[0].mxu0
  %v774 = vadd.f32 0.0, %v773
  %v775 = vpop.f32.mrb[0].mxu0
  %776 = vmatprep.mubr.f32.mxu0 0.0
  %777 = vmatmul.mubr.f32.gmra.mrb[0].mxu0 %v697
  %v778 = vpop.f32.mrb[0].mxu0
  %v779 = vadd.f32 0.0, %v778
  %v780 = vpop.f32.mrb[0].mxu0
  %781 = vmatprep.mubr.f32.mxu0 0.0
  %782 = vmatmul.mubr.f32.gmra.mrb[0].mxu0 %v700
  %v783 = vpop.f32.mrb[0].mxu0
  %v784 = vadd.f32 0.0, %v783
  %v785 = vpop.f32.mrb[0].mxu0
  %786 = vdwg.mxu0
  %v788 = vsel %vm69, %v672, 0
  %v791 = vsel %vm69, %v677, 0
  %v794 = vsel %vm69, %v682, 0
  %v797 = vsel %vm69, %v687, 0
  %799 = vmatprep.subr.mxu0 0.0
  %800 = vmatpush1.msra.mxu0 %v62
  %801 = vmatprep.subr.mxu0 0.0
  %802 = vmatpush1.msra.mxu0 0.0
  %803 = vmatprep.subr.mxu0 0.0
  %804 = vmatpush1.msra.mxu0 0.0
  %805 = vmatprep.subr.mxu0 0.0
  %806 = vmatpush1.msra.mxu0 0.0
  %807 = vmatprep.subr.mxu0 0.0
  %808 = vmatpush1.msra.mxu0 0.0
  %809 = vmatprep.subr.mxu0 0.0
  %810 = vmatpush1.msra.mxu0 0.0
  %811 = vmatprep.subr.mxu0 0.0
  %812 = vmatpush1.msra.mxu0 0.0
  %813 = vmatprep.subr.mxu0 0.0
  %814 = vmatpush1.msra.mxu0 0.0
  %815 = vmatprep.subr.mxu0 0.0
  %816 = vmatpush1.msra.mxu0 0.0
  %817 = vmatprep.subr.mxu0 0.0
  %818 = vmatpush1.msra.mxu0 0.0
  %819 = vmatprep.subr.mxu0 0.0
  %820 = vmatpush1.msra.mxu0 0.0
  %821 = vmatprep.subr.mxu0 0.0
  %822 = vmatpush1.msra.mxu0 0.0
  %823 = vmatprep.subr.mxu0 0.0
  %824 = vmatpush1.msra.mxu0 0.0
  %825 = vmatprep.subr.mxu0 0.0
  %826 = vmatpush1.msra.mxu0 0.0
  %827 = vmatprep.subr.mxu0 0.0
  %828 = vmatpush1.msra.mxu0 0.0
  %829 = vmatprep.subr.mxu0 0.0
  %830 = vmatpush1.msra.mxu0 0.0
  %831 = vmatprep.subr.mxu0 0.0
  %832 = vmatpush1.msra.mxu0 0.0
  %833 = vmatprep.subr.mxu0 0.0
  %834 = vmatpush1.msra.mxu0 0.0
  %835 = vmatprep.subr.mxu0 0.0
  %836 = vmatpush1.msra.mxu0 0.0
  %837 = vmatprep.subr.mxu0 0.0
  %838 = vmatpush1.msra.mxu0 0.0
  %839 = vmatprep.subr.mxu0 0.0
  %840 = vmatpush1.msra.mxu0 0.0
  %841 = vmatprep.subr.mxu0 0.0
  %842 = vmatpush1.msra.mxu0 0.0
  %843 = vmatprep.subr.mxu0 0.0
  %844 = vmatpush1.msra.mxu0 0.0
  %845 = vmatprep.subr.mxu0 0.0
  %846 = vmatpush1.msra.mxu0 0.0
  %847 = vmatprep.subr.mxu0 0.0
  %848 = vmatpush1.msra.mxu0 0.0
  %849 = vmatprep.subr.mxu0 0.0
  %850 = vmatpush1.msra.mxu0 0.0
  %851 = vmatprep.subr.mxu0 0.0
  %852 = vmatpush1.msra.mxu0 0.0
  %853 = vmatprep.subr.mxu0 0.0
  %854 = vmatpush1.msra.mxu0 0.0
  %855 = vmatprep.subr.mxu0 0.0
  %856 = vmatpush1.msra.mxu0 0.0
  %857 = vmatprep.subr.mxu0 0.0
  %858 = vmatpush1.msra.mxu0 0.0
  %859 = vmatprep.subr.mxu0 0.0
  %860 = vmatpush1.msra.mxu0 0.0
  %861 = vmatprep.subr.mxu0 0.0
  %862 = vmatpush1.msra.mxu0 0.0
  %863 = vmatprep.mubr.f32.mxu0 0.0
  %864 = vmatmul.mubr.f32.gmra.mrb[0].mxu0 %v788
  %v865 = vpop.f32.mrb[0].mxu0
  %v866 = vadd.f32 0.0, %v865
  %v867 = vpop.f32.mrb[0].mxu0
  %868 = vmatprep.mubr.f32.mxu0 0.0
  %869 = vmatmul.mubr.f32.gmra.mrb[0].mxu0 %v791
  %v870 = vpop.f32.mrb[0].mxu0
  %v871 = vadd.f32 0.0, %v870
  %v872 = vpop.f32.mrb[0].mxu0
  %873 = vmatprep.mubr.f32.mxu0 0.0
  %874 = vmatmul.mubr.f32.gmra.mrb[0].mxu0 %v794
  %v875 = vpop.f32.mrb[0].mxu0
  %v876 = vadd.f32 0.0, %v875
  %v877 = vpop.f32.mrb[0].mxu0
  %878 = vmatprep.mubr.f32.mxu0 0.0
  %879 = vmatmul.mubr.f32.gmra.mrb[0].mxu0 %v797
  %v880 = vpop.f32.mrb[0].mxu0
  %v881 = vadd.f32 0.0, %v880
  %v882 = vpop.f32.mrb[0].mxu0
  %883 = vdwg.mxu0
  %v885 = vsel %vm69, %v769, 0
  %v888 = vsel %vm69, %v774, 0
  %v891 = vsel %vm69, %v779, 0
  %v894 = vsel %vm69, %v784, 0
  %896 = vmatprep.subr.mxu0 0.0
  %897 = vmatpush1.msra.mxu0 %v63
  %898 = vmatprep.subr.mxu0 0.0
  %899 = vmatpush1.msra.mxu0 0.0
  %900 = vmatprep.subr.mxu0 0.0
  %901 = vmatpush1.msra.mxu0 0.0
  %902 = vmatprep.subr.mxu0 0.0
  %903 = vmatpush1.msra.mxu0 0.0
  %904 = vmatprep.subr.mxu0 0.0
  %905 = vmatpush1.msra.mxu0 0.0
  %906 = vmatprep.subr.mxu0 0.0
  %907 = vmatpush1.msra.mxu0 0.0
  %908 = vmatprep.subr.mxu0 0.0
  %909 = vmatpush1.msra.mxu0 0.0
  %910 = vmatprep.subr.mxu0 0.0
  %911 = vmatpush1.msra.mxu0 0.0
  %912 = vmatprep.subr.mxu0 0.0
  %913 = vmatpush1.msra.mxu0 0.0
  %914 = vmatprep.subr.mxu0 0.0
  %915 = vmatpush1.msra.mxu0 0.0
  %916 = vmatprep.subr.mxu0 0.0
  %917 = vmatpush1.msra.mxu0 0.0
  %918 = vmatprep.subr.mxu0 0.0
  %919 = vmatpush1.msra.mxu0 0.0
  %920 = vmatprep.subr.mxu0 0.0
  %921 = vmatpush1.msra.mxu0 0.0
  %922 = vmatprep.subr.mxu0 0.0
  %923 = vmatpush1.msra.mxu0 0.0
  %924 = vmatprep.subr.mxu0 0.0
  %925 = vmatpush1.msra.mxu0 0.0
  %926 = vmatprep.subr.mxu0 0.0
  %927 = vmatpush1.msra.mxu0 0.0
  %928 = vmatprep.subr.mxu0 0.0
  %929 = vmatpush1.msra.mxu0 0.0
  %930 = vmatprep.subr.mxu0 0.0
  %931 = vmatpush1.msra.mxu0 0.0
  %932 = vmatprep.subr.mxu0 0.0
  %933 = vmatpush1.msra.mxu0 0.0
  %934 = vmatprep.subr.mxu0 0.0
  %935 = vmatpush1.msra.mxu0 0.0
  %936 = vmatprep.subr.mxu0 0.0
  %937 = vmatpush1.msra.mxu0 0.0
  %938 = vmatprep.subr.mxu0 0.0
  %939 = vmatpush1.msra.mxu0 0.0
  %940 = vmatprep.subr.mxu0 0.0
  %941 = vmatpush1.msra.mxu0 0.0
  %942 = vmatprep.subr.mxu0 0.0
  %943 = vmatpush1.msra.mxu0 0.0
  %944 = vmatprep.subr.mxu0 0.0
  %945 = vmatpush1.msra.mxu0 0.0
  %946 = vmatprep.subr.mxu0 0.0
  %947 = vmatpush1.msra.mxu0 0.0
  %948 = vmatprep.subr.mxu0 0.0
  %949 = vmatpush1.msra.mxu0 0.0
  %950 = vmatprep.subr.mxu0 0.0
  %951 = vmatpush1.msra.mxu0 0.0
  %952 = vmatprep.subr.mxu0 0.0
  %953 = vmatpush1.msra.mxu0 0.0
  %954 = vmatprep.subr.mxu0 0.0
  %955 = vmatpush1.msra.mxu0 0.0
  %956 = vmatprep.subr.mxu0 0.0
  %957 = vmatpush1.msra.mxu0 0.0
  %958 = vmatprep.subr.mxu0 0.0
  %959 = vmatpush1.msra.mxu0 0.0
  %960 = vmatprep.mubr.f32.mxu0 0.0
  %961 = vmatmul.mubr.f32.gmra.mrb[0].mxu0 %v885
  %v962 = vpop.f32.mrb[0].mxu0
  %v963 = vadd.f32 0.0, %v962
  %v964 = vpop.f32.mrb[0].mxu0
  %965 = vmatprep.mubr.f32.mxu0 0.0
  %966 = vmatmul.mubr.f32.gmra.mrb[0].mxu0 %v888
  %v967 = vpop.f32.mrb[0].mxu0
  %v968 = vadd.f32 0.0, %v967
  %v969 = vpop.f32.mrb[0].mxu0
  %970 = vmatprep.mubr.f32.mxu0 0.0
  %971 = vmatmul.mubr.f32.gmra.mrb[0].mxu0 %v891
  %v972 = vpop.f32.mrb[0].mxu0
  %v973 = vadd.f32 0.0, %v972
  %v974 = vpop.f32.mrb[0].mxu0
  %975 = vmatprep.mubr.f32.mxu0 0.0
  %976 = vmatmul.mubr.f32.gmra.mrb[0].mxu0 %v894
  %v977 = vpop.f32.mrb[0].mxu0
  %v978 = vadd.f32 0.0, %v977
  %v979 = vpop.f32.mrb[0].mxu0
  %980 = vdwg.mxu0
  %vm981 = vcmask 130048
  %v982 = vsel %vm981, %v866, 0.0
  %v983 = vsel %vm981, %v963, 0.0
  %v984 = vadd.f32 %v982, %v983
  %v985 = vsel %vm981, %v871, 0.0
  %v986 = vsel %vm981, %v968, 0.0
  %v987 = vadd.f32 %v985, %v986
  %v988 = vsel %vm981, %v876, 0.0
  %v989 = vsel %vm981, %v973, 0.0
  %v990 = vadd.f32 %v988, %v989
  %v991 = vsel %vm981, %v881, 0.0
  %v992 = vsel %vm981, %v978, 0.0
  %v993 = vadd.f32 %v991, %v992
  %v995 = vlaneseq
  %v996 = vshrl.u32 %v995, 7
  %v997 = vsub.s32 0, %v996
  %v998 = vrot.slane %v68, %v997
  %v1000 = vadd.f32 %v984, %v998
  %v1001 = vadd.f32 %v987, %v998
  %v1002 = vadd.f32 %v990, %v998
  %v1003 = vadd.f32 %v993, %v998
  %v1004 = vmax.f32 %v1000, 0.0
  %v1005 = vmax.f32 %v1001, 0.0
  %v1006 = vmax.f32 %v1002, 0.0
  %v1007 = vmax.f32 %v1003, 0.0
  %v1008 = vld [vmem:[%s7] sm:$0xff]
  %v1009 = vld [vmem:[%s7 + $0x8] sm:$0xff]
  %v1010 = vld [vmem:[%s7 + $0x10] sm:$0xff]
  %v1011 = vld [vmem:[%s7 + $0x18] sm:$0xff]
  %v1012 = vld [vmem:[%s8] sm:$0x3]
  %v1013 = vld [vmem:[%s9] sm:$0x3]
  %v1014 = vld [vmem:[%s10] sm:$0x1]
  %v1016 = vsel %vm981, %v1004, 0
  %v1019 = vsel %vm981, %v1005, 0
  %v1022 = vsel %vm981, %v1006, 0
  %v1025 = vsel %vm981, %v1007, 0
  %1027 = vmatprep.subr.mxu0 0.0
  %1028 = vmatpush1.msra.mxu0 %v1008
  %1029 = vmatprep.subr.mxu0 0.0
  %1030 = vmatpush1.msra.mxu0 %v1009
  %1031 = vmatprep.subr.mxu0 0.0
  %1032 = vmatpush1.msra.mxu0 0.0
  %1033 = vmatprep.subr.mxu0 0.0
  %1034 = vmatpush1.msra.mxu0 0.0
  %1035 = vmatprep.subr.mxu0 0.0
  %1036 = vmatpush1.msra.mxu0 0.0
  %1037 = vmatprep.subr.mxu0 0.0
  %1038 = vmatpush1.msra.mxu0 0.0
  %1039 = vmatprep.subr.mxu0 0.0
  %1040 = vmatpush1.msra.mxu0 0.0
  %1041 = vmatprep.subr.mxu0 0.0
  %1042 = vmatpush1.msra.mxu0 0.0
  %1043 = vmatprep.subr.mxu0 0.0
  %1044 = vmatpush1.msra.mxu0 0.0
  %1045 = vmatprep.subr.mxu0 0.0
  %1046 = vmatpush1.msra.mxu0 0.0
  %1047 = vmatprep.subr.mxu0 0.0
  %1048 = vmatpush1.msra.mxu0 0.0
  %1049 = vmatprep.subr.mxu0 0.0
  %1050 = vmatpush1.msra.mxu0 0.0
  %1051 = vmatprep.subr.mxu0 0.0
  %1052 = vmatpush1.msra.mxu0 0.0
  %1053 = vmatprep.subr.mxu0 0.0
  %1054 = vmatpush1.msra.mxu0 0.0
  %1055 = vmatprep.subr.mxu0 0.0
  %1056 = vmatpush1.msra.mxu0 0.0
  %1057 = vmatprep.subr.mxu0 0.0
  %1058 = vmatpush1.msra.mxu0 0.0
  %1059 = vmatprep.subr.mxu0 0.0
  %1060 = vmatpush1.msra.mxu0 0.0
  %1061 = vmatprep.subr.mxu0 0.0
  %1062 = vmatpush1.msra.mxu0 0.0
  %1063 = vmatprep.subr.mxu0 0.0
  %1064 = vmatpush1.msra.mxu0 0.0
  %1065 = vmatprep.subr.mxu0 0.0
  %1066 = vmatpush1.msra.mxu0 0.0
  %1067 = vmatprep.subr.mxu0 0.0
  %1068 = vmatpush1.msra.mxu0 0.0
  %1069 = vmatprep.subr.mxu0 0.0
  %1070 = vmatpush1.msra.mxu0 0.0
  %1071 = vmatprep.subr.mxu0 0.0
  %1072 = vmatpush1.msra.mxu0 0.0
  %1073 = vmatprep.subr.mxu0 0.0
  %1074 = vmatpush1.msra.mxu0 0.0
  %1075 = vmatprep.subr.mxu0 0.0
  %1076 = vmatpush1.msra.mxu0 0.0
  %1077 = vmatprep.subr.mxu0 0.0
  %1078 = vmatpush1.msra.mxu0 0.0
  %1079 = vmatprep.subr.mxu0 0.0
  %1080 = vmatpush1.msra.mxu0 0.0
  %1081 = vmatprep.subr.mxu0 0.0
  %1082 = vmatpush1.msra.mxu0 0.0
  %1083 = vmatprep.subr.mxu0 0.0
  %1084 = vmatpush1.msra.mxu0 0.0
  %1085 = vmatprep.subr.mxu0 0.0
  %1086 = vmatpush1.msra.mxu0 0.0
  %1087 = vmatprep.subr.mxu0 0.0
  %1088 = vmatpush1.msra.mxu0 0.0
  %1089 = vmatprep.subr.mxu0 0.0
  %1090 = vmatpush1.msra.mxu0 0.0
  %1091 = vmatprep.mubr.f32.mxu0 0.0
  %1092 = vmatmul.mubr.f32.gmra.mrb[0].mxu0 %v1016
  %v1093 = vpop.f32.mrb[0].mxu0
  %v1094 = vadd.f32 0.0, %v1093
  %v1095 = vpop.f32.mrb[0].mxu0
  %1096 = vmatprep.mubr.f32.mxu0 0.0
  %1097 = vmatmul.mubr.f32.gmra.mrb[0].mxu0 %v1019
  %v1098 = vpop.f32.mrb[0].mxu0
  %v1099 = vadd.f32 0.0, %v1098
  %v1100 = vpop.f32.mrb[0].mxu0
  %1101 = vmatprep.mubr.f32.mxu0 0.0
  %1102 = vmatmul.mubr.f32.gmra.mrb[0].mxu0 %v1022
  %v1103 = vpop.f32.mrb[0].mxu0
  %v1104 = vadd.f32 0.0, %v1103
  %v1105 = vpop.f32.mrb[0].mxu0
  %1106 = vmatprep.mubr.f32.mxu0 0.0
  %1107 = vmatmul.mubr.f32.gmra.mrb[0].mxu0 %v1025
  %v1108 = vpop.f32.mrb[0].mxu0
  %v1109 = vadd.f32 0.0, %v1108
  %v1110 = vpop.f32.mrb[0].mxu0
  %1111 = vdwg.mxu0
  %1112 = vmatprep.subr.mxu0 0.0
  %1113 = vmatpush1.msra.mxu0 %v1010
  %1114 = vmatprep.subr.mxu0 0.0
  %1115 = vmatpush1.msra.mxu0 %v1011
  %1116 = vmatprep.subr.mxu0 0.0
  %1117 = vmatpush1.msra.mxu0 0.0
  %1118 = vmatprep.subr.mxu0 0.0
  %1119 = vmatpush1.msra.mxu0 0.0
  %1120 = vmatprep.subr.mxu0 0.0
  %1121 = vmatpush1.msra.mxu0 0.0
  %1122 = vmatprep.subr.mxu0 0.0
  %1123 = vmatpush1.msra.mxu0 0.0
  %1124 = vmatprep.subr.mxu0 0.0
  %1125 = vmatpush1.msra.mxu0 0.0
  %1126 = vmatprep.subr.mxu0 0.0
  %1127 = vmatpush1.msra.mxu0 0.0
  %1128 = vmatprep.subr.mxu0 0.0
  %1129 = vmatpush1.msra.mxu0 0.0
  %1130 = vmatprep.subr.mxu0 0.0
  %1131 = vmatpush1.msra.mxu0 0.0
  %1132 = vmatprep.subr.mxu0 0.0
  %1133 = vmatpush1.msra.mxu0 0.0
  %1134 = vmatprep.subr.mxu0 0.0
  %1135 = vmatpush1.msra.mxu0 0.0
  %1136 = vmatprep.subr.mxu0 0.0
  %1137 = vmatpush1.msra.mxu0 0.0
  %1138 = vmatprep.subr.mxu0 0.0
  %1139 = vmatpush1.msra.mxu0 0.0
  %1140 = vmatprep.subr.mxu0 0.0
  %1141 = vmatpush1.msra.mxu0 0.0
  %1142 = vmatprep.subr.mxu0 0.0
  %1143 = vmatpush1.msra.mxu0 0.0
  %1144 = vmatprep.subr.mxu0 0.0
  %1145 = vmatpush1.msra.mxu0 0.0
  %1146 = vmatprep.subr.mxu0 0.0
  %1147 = vmatpush1.msra.mxu0 0.0
  %1148 = vmatprep.subr.mxu0 0.0
  %1149 = vmatpush1.msra.mxu0 0.0
  %1150 = vmatprep.subr.mxu0 0.0
  %1151 = vmatpush1.msra.mxu0 0.0
  %1152 = vmatprep.subr.mxu0 0.0
  %1153 = vmatpush1.msra.mxu0 0.0
  %1154 = vmatprep.subr.mxu0 0.0
  %1155 = vmatpush1.msra.mxu0 0.0
  %1156 = vmatprep.subr.mxu0 0.0
  %1157 = vmatpush1.msra.mxu0 0.0
  %1158 = vmatprep.subr.mxu0 0.0
  %1159 = vmatpush1.msra.mxu0 0.0
  %1160 = vmatprep.subr.mxu0 0.0
  %1161 = vmatpush1.msra.mxu0 0.0
  %1162 = vmatprep.subr.mxu0 0.0
  %1163 = vmatpush1.msra.mxu0 0.0
  %1164 = vmatprep.subr.mxu0 0.0
  %1165 = vmatpush1.msra.mxu0 0.0
  %1166 = vmatprep.subr.mxu0 0.0
  %1167 = vmatpush1.msra.mxu0 0.0
  %1168 = vmatprep.subr.mxu0 0.0
  %1169 = vmatpush1.msra.mxu0 0.0
  %1170 = vmatprep.subr.mxu0 0.0
  %1171 = vmatpush1.msra.mxu0 0.0
  %1172 = vmatprep.subr.mxu0 0.0
  %1173 = vmatpush1.msra.mxu0 0.0
  %1174 = vmatprep.subr.mxu0 0.0
  %1175 = vmatpush1.msra.mxu0 0.0
  %1176 = vmatprep.mubr.f32.mxu0 0.0
  %1177 = vmatmul.mubr.f32.gmra.mrb[0].mxu0 %v1016
  %v1178 = vpop.f32.mrb[0].mxu0
  %v1179 = vadd.f32 0.0, %v1178
  %v1180 = vpop.f32.mrb[0].mxu0
  %1181 = vmatprep.mubr.f32.mxu0 0.0
  %1182 = vmatmul.mubr.f32.gmra.mrb[0].mxu0 %v1019
  %v1183 = vpop.f32.mrb[0].mxu0
  %v1184 = vadd.f32 0.0, %v1183
  %v1185 = vpop.f32.mrb[0].mxu0
  %1186 = vmatprep.mubr.f32.mxu0 0.0
  %1187 = vmatmul.mubr.f32.gmra.mrb[0].mxu0 %v1022
  %v1188 = vpop.f32.mrb[0].mxu0
  %v1189 = vadd.f32 0.0, %v1188
  %v1190 = vpop.f32.mrb[0].mxu0
  %1191 = vmatprep.mubr.f32.mxu0 0.0
  %1192 = vmatmul.mubr.f32.gmra.mrb[0].mxu0 %v1025
  %v1193 = vpop.f32.mrb[0].mxu0
  %v1194 = vadd.f32 0.0, %v1193
  %v1195 = vpop.f32.mrb[0].mxu0
  %1196 = vdwg.mxu0
  %v1199 = vunpack.c.l.s4 1966171168
  %v1200 = vunpack.c.0.s8 %v1199
  %v1201 = vlaneseq
  %v1202 = vshrl.u32 %v1201, 7
  %v1203 = vsub.s32 %v1200, %v1202
  %v1204 = vrot.slane %v1013, %v1203
  %v1205 = vcombine.high %v1204, %v1204
  %v1207 = vunpack.c.l.s4 1966171168
  %v1208 = vunpack.c.0.s8 %v1207
  %v1209 = vlaneseq
  %v1210 = vshrl.u32 %v1209, 7
  %v1211 = vsub.s32 %v1208, %v1210
  %v1212 = vrot.slane %v1204, %v1211
  %v1214 = vunpack.c.l.s4 1966171168
  %v1215 = vunpack.c.0.s8 %v1214
  %v1216 = vlaneseq
  %v1217 = vshrl.u32 %v1216, 7
  %v1218 = vsub.s32 %v1215, %v1217
  %v1219 = vrot.slane %v1205, %v1218
  %v1220 = vlaneseq
  %v1221 = vshrl.u32 %v1220, 7
  %v1222 = vsub.s32 0, %v1221
  %v1223 = vrot.slane %v1212, %v1222
  %v1224 = vlaneseq
  %v1225 = vshrl.u32 %v1224, 7
  %v1226 = vsub.s32 0, %v1225
  %v1227 = vrot.slane %v1219, %v1226
  %v1230 = vmul.f32 %v1094, %v1223
  %v1231 = vmul.f32 %v1099, %v1223
  %v1232 = vmul.f32 %v1104, %v1223
  %v1233 = vmul.f32 %v1109, %v1223
  %v1234 = vmul.f32 %v1179, %v1227
  %v1235 = vmul.f32 %v1184, %v1227
  %v1236 = vmul.f32 %v1189, %v1227
  %v1237 = vmul.f32 %v1194, %v1227
  %v1238 = vsel %vm69, %v1230, 0.0
  %1239 = vadd.xlane.f32.xlu0 %v1238
  %v1240 = vpop.xlane.xlu0 %1239
  %v1241 = vsel %vm69, %v1231, 0.0
  %1242 = vadd.xlane.f32.xlu0 %v1241
  %v1243 = vpop.xlane.xlu0 %1242
  %v1244 = vsel %vm69, %v1232, 0.0
  %1245 = vadd.xlane.f32.xlu0 %v1244
  %v1246 = vpop.xlane.xlu0 %1245
  %v1247 = vsel %vm69, %v1233, 0.0
  %1248 = vadd.xlane.f32.xlu0 %v1247
  %v1249 = vpop.xlane.xlu0 %1248
  %v1250 = vsel %vm69, %v1234, 0.0
  %1251 = vadd.xlane.f32.xlu0 %v1250
  %v1252 = vpop.xlane.xlu0 %1251
  %v1253 = vsel %vm69, %v1235, 0.0
  %1254 = vadd.xlane.f32.xlu0 %v1253
  %v1255 = vpop.xlane.xlu0 %1254
  %v1256 = vsel %vm69, %v1236, 0.0
  %1257 = vadd.xlane.f32.xlu0 %v1256
  %v1258 = vpop.xlane.xlu0 %1257
  %v1259 = vsel %vm69, %v1237, 0.0
  %1260 = vadd.xlane.f32.xlu0 %v1259
  %v1261 = vpop.xlane.xlu0 %1260
  %v1264 = vunpack.c.l.s4 1966171168
  %v1265 = vunpack.c.0.s8 %v1264
  %v1266 = vlaneseq
  %v1267 = vshrl.u32 %v1266, 7
  %v1268 = vsub.s32 %v1265, %v1267
  %v1269 = vrot.slane %v1012, %v1268
  %v1270 = vcombine.high %v1269, %v1269
  %v1272 = vunpack.c.l.s4 1966171168
  %v1273 = vunpack.c.0.s8 %v1272
  %v1274 = vlaneseq
  %v1275 = vshrl.u32 %v1274, 7
  %v1276 = vsub.s32 %v1273, %v1275
  %v1277 = vrot.slane %v1269, %v1276
  %v1279 = vunpack.c.l.s4 1966171168
  %v1280 = vunpack.c.0.s8 %v1279
  %v1281 = vlaneseq
  %v1282 = vshrl.u32 %v1281, 7
  %v1283 = vsub.s32 %v1280, %v1282
  %v1284 = vrot.slane %v1270, %v1283
  %v1285 = vlaneseq
  %v1286 = vshrl.u32 %v1285, 7
  %v1287 = vsub.s32 0, %v1286
  %v1288 = vrot.slane %v1277, %v1287
  %v1289 = vlaneseq
  %v1290 = vshrl.u32 %v1289, 7
  %v1291 = vsub.s32 0, %v1290
  %v1292 = vrot.slane %v1284, %v1291
  %v1295 = vmul.f32 %v1094, %v1288
  %v1296 = vmul.f32 %v1099, %v1288
  %v1297 = vmul.f32 %v1104, %v1288
  %v1298 = vmul.f32 %v1109, %v1288
  %v1299 = vmul.f32 %v1179, %v1292
  %v1300 = vmul.f32 %v1184, %v1292
  %v1301 = vmul.f32 %v1189, %v1292
  %v1302 = vmul.f32 %v1194, %v1292
  %v1303 = vsel %vm69, %v1295, 0.0
  %1304 = vadd.xlane.f32.xlu0 %v1303
  %v1305 = vpop.xlane.xlu0 %1304
  %v1306 = vsel %vm69, %v1296, 0.0
  %1307 = vadd.xlane.f32.xlu0 %v1306
  %v1308 = vpop.xlane.xlu0 %1307
  %v1309 = vsel %vm69, %v1297, 0.0
  %1310 = vadd.xlane.f32.xlu0 %v1309
  %v1311 = vpop.xlane.xlu0 %1310
  %v1312 = vsel %vm69, %v1298, 0.0
  %1313 = vadd.xlane.f32.xlu0 %v1312
  %v1314 = vpop.xlane.xlu0 %1313
  %v1315 = vsel %vm69, %v1299, 0.0
  %1316 = vadd.xlane.f32.xlu0 %v1315
  %v1317 = vpop.xlane.xlu0 %1316
  %v1318 = vsel %vm69, %v1300, 0.0
  %1319 = vadd.xlane.f32.xlu0 %v1318
  %v1320 = vpop.xlane.xlu0 %1319
  %v1321 = vsel %vm69, %v1301, 0.0
  %1322 = vadd.xlane.f32.xlu0 %v1321
  %v1323 = vpop.xlane.xlu0 %1322
  %v1324 = vsel %vm69, %v1302, 0.0
  %1325 = vadd.xlane.f32.xlu0 %v1324
  %v1326 = vpop.xlane.xlu0 %1325
  %v1335 = vlaneseq
  %v1336 = vshrl.u32 %v1335, 7
  %v1337 = vsub.s32 %v391, %v1336
  %v1338 = vrot.slane %v1305, %v1337
  %v1339 = vlaneseq
  %v1340 = vshrl.u32 %v1339, 7
  %v1341 = vsub.s32 %v396, %v1340
  %v1342 = vrot.slane %v1308, %v1341
  %v1343 = vsel %vm401, %v1342, %v1338
  %v1344 = vlaneseq
  %v1345 = vshrl.u32 %v1344, 7
  %v1346 = vsub.s32 %v403, %v1345
  %v1347 = vrot.slane %v1311, %v1346
  %v1348 = vsel %vm408, %v1347, %v1343
  %v1349 = vlaneseq
  %v1350 = vshrl.u32 %v1349, 7
  %v1351 = vsub.s32 %v410, %v1350
  %v1352 = vrot.slane %v1314, %v1351
  %v1353 = vsel %vm415, %v1352, %v1348
  %v1354 = vlaneseq
  %v1355 = vshrl.u32 %v1354, 7
  %v1356 = vsub.s32 %v391, %v1355
  %v1357 = vrot.slane %v1317, %v1356
  %v1358 = vlaneseq
  %v1359 = vshrl.u32 %v1358, 7
  %v1360 = vsub.s32 %v396, %v1359
  %v1361 = vrot.slane %v1320, %v1360
  %v1362 = vsel %vm401, %v1361, %v1357
  %v1363 = vlaneseq
  %v1364 = vshrl.u32 %v1363, 7
  %v1365 = vsub.s32 %v403, %v1364
  %v1366 = vrot.slane %v1323, %v1365
  %v1367 = vsel %vm408, %v1366, %v1362
  %v1368 = vlaneseq
  %v1369 = vshrl.u32 %v1368, 7
  %v1370 = vsub.s32 %v410, %v1369
  %v1371 = vrot.slane %v1326, %v1370
  %v1372 = vsel %vm415, %v1371, %v1367
  %v1373 = vsel %vm436, %v1353, %v1353
  %v1374 = vsel %vm438, %v1353, %v1373
  %v1375 = vsel %vm440, %v1353, %v1374
  %v1376 = vsel %vm442, %v1353, %v1375
  %v1377 = vsel %vm444, %v1353, %v1376
  %v1378 = vsel %vm446, %v1353, %v1377
  %v1379 = vsel %vm436, %v1372, %v1372
  %v1380 = vsel %vm438, %v1372, %v1379
  %v1381 = vsel %vm440, %v1372, %v1380
  %v1382 = vsel %vm442, %v1372, %v1381
  %v1383 = vsel %vm444, %v1372, %v1382
  %v1384 = vsel %vm446, %v1372, %v1383
  %v1387 = vadd.f32 %v1240, %v1378
  %v1388 = vadd.f32 %v1243, %v1378
  %v1389 = vadd.f32 %v1246, %v1378
  %v1390 = vadd.f32 %v1249, %v1378
  %v1391 = vadd.f32 %v1252, %v1384
  %v1392 = vadd.f32 %v1255, %v1384
  %v1393 = vadd.f32 %v1258, %v1384
  %v1394 = vadd.f32 %v1261, %v1384
  %vm1395 = vcmp.gt.f32.partialorder %v1387, 0.0
  %vm1396 = vcmp.gt.f32.partialorder %v1388, 0.0
  %vm1397 = vcmp.gt.f32.partialorder %v1389, 0.0
  %vm1398 = vcmp.gt.f32.partialorder %v1390, 0.0
  %vm1399 = vcmp.gt.f32.partialorder %v1391, 0.0
  %vm1400 = vcmp.gt.f32.partialorder %v1392, 0.0
  %vm1401 = vcmp.gt.f32.partialorder %v1393, 0.0
  %vm1402 = vcmp.gt.f32.partialorder %v1394, 0.0
  %v1403 = vmul.f32 %v1387, 0.2
  %v1404 = vmul.f32 %v1388, 0.2
  %v1405 = vmul.f32 %v1389, 0.2
  %v1406 = vmul.f32 %v1390, 0.2
  %v1407 = vmul.f32 %v1391, 0.2
  %v1408 = vmul.f32 %v1392, 0.2
  %v1409 = vmul.f32 %v1393, 0.2
  %v1410 = vmul.f32 %v1394, 0.2
  %v1411 = vsel %vm1395, %v1387, %v1403
  %v1412 = vsel %vm1396, %v1388, %v1404
  %v1413 = vsel %vm1397, %v1389, %v1405
  %v1414 = vsel %vm1398, %v1390, %v1406
  %v1415 = vsel %vm1399, %v1391, %v1407
  %v1416 = vsel %vm1400, %v1392, %v1408
  %v1417 = vsel %vm1401, %v1393, %v1409
  %v1418 = vsel %vm1402, %v1394, %v1410
  %v1419 = vsel %vm492, %v1411, -1e+30
  %v1420 = vsel %vm493, %v1412, -1e+30
  %v1421 = vsel %vm494, %v1413, -1e+30
  %v1422 = vsel %vm495, %v1414, -1e+30
  %v1423 = vsel %vm492, %v1415, -1e+30
  %v1424 = vsel %vm493, %v1416, -1e+30
  %v1425 = vsel %vm494, %v1417, -1e+30
  %v1426 = vsel %vm495, %v1418, -1e+30
  %v1427 = vsel %vm504, %v1419, -inf
  %1428 = vmax.xlane.f32.xlu0 %v1427
  %v1429 = vpop.xlane.xlu0 %1428
  %v1430 = vsel %vm504, %v1420, -inf
  %1431 = vmax.xlane.f32.xlu0 %v1430
  %v1432 = vpop.xlane.xlu0 %1431
  %v1433 = vsel %vm504, %v1421, -inf
  %1434 = vmax.xlane.f32.xlu0 %v1433
  %v1435 = vpop.xlane.xlu0 %1434
  %v1436 = vsel %vm504, %v1422, -inf
  %1437 = vmax.xlane.f32.xlu0 %v1436
  %v1438 = vpop.xlane.xlu0 %1437
  %v1439 = vsel %vm504, %v1423, -inf
  %1440 = vmax.xlane.f32.xlu0 %v1439
  %v1441 = vpop.xlane.xlu0 %1440
  %v1442 = vsel %vm504, %v1424, -inf
  %1443 = vmax.xlane.f32.xlu0 %v1442
  %v1444 = vpop.xlane.xlu0 %1443
  %v1445 = vsel %vm504, %v1425, -inf
  %1446 = vmax.xlane.f32.xlu0 %v1445
  %v1447 = vpop.xlane.xlu0 %1446
  %v1448 = vsel %vm504, %v1426, -inf
  %1449 = vmax.xlane.f32.xlu0 %v1448
  %v1450 = vpop.xlane.xlu0 %1449
  %v1451 = vsub.f32 %v1419, %v1429
  %v1452 = vsub.f32 %v1420, %v1432
  %v1453 = vsub.f32 %v1421, %v1435
  %v1454 = vsub.f32 %v1422, %v1438
  %v1455 = vsub.f32 %v1423, %v1441
  %v1456 = vsub.f32 %v1424, %v1444
  %v1457 = vsub.f32 %v1425, %v1447
  %v1458 = vsub.f32 %v1426, %v1450
  %v1459 = vmul.f32 %v1451, 1.442695
  %v1460 = vpow.pop %v1459
  %v1461 = vmul.f32 %v1452, 1.442695
  %v1462 = vpow.pop %v1461
  %v1463 = vmul.f32 %v1453, 1.442695
  %v1464 = vpow.pop %v1463
  %v1465 = vmul.f32 %v1454, 1.442695
  %v1466 = vpow.pop %v1465
  %v1467 = vmul.f32 %v1455, 1.442695
  %v1468 = vpow.pop %v1467
  %v1469 = vmul.f32 %v1456, 1.442695
  %v1470 = vpow.pop %v1469
  %v1471 = vmul.f32 %v1457, 1.442695
  %v1472 = vpow.pop %v1471
  %v1473 = vmul.f32 %v1458, 1.442695
  %v1474 = vpow.pop %v1473
  %v1475 = vsel %vm504, %v1460, 0.0
  %1476 = vadd.xlane.f32.xlu0 %v1475
  %v1477 = vpop.xlane.xlu0 %1476
  %v1478 = vsel %vm504, %v1462, 0.0
  %1479 = vadd.xlane.f32.xlu0 %v1478
  %v1480 = vpop.xlane.xlu0 %1479
  %v1481 = vsel %vm504, %v1464, 0.0
  %1482 = vadd.xlane.f32.xlu0 %v1481
  %v1483 = vpop.xlane.xlu0 %1482
  %v1484 = vsel %vm504, %v1466, 0.0
  %1485 = vadd.xlane.f32.xlu0 %v1484
  %v1486 = vpop.xlane.xlu0 %1485
  %v1487 = vsel %vm504, %v1468, 0.0
  %1488 = vadd.xlane.f32.xlu0 %v1487
  %v1489 = vpop.xlane.xlu0 %1488
  %v1490 = vsel %vm504, %v1470, 0.0
  %1491 = vadd.xlane.f32.xlu0 %v1490
  %v1492 = vpop.xlane.xlu0 %1491
  %v1493 = vsel %vm504, %v1472, 0.0
  %1494 = vadd.xlane.f32.xlu0 %v1493
  %v1495 = vpop.xlane.xlu0 %1494
  %v1496 = vsel %vm504, %v1474, 0.0
  %1497 = vadd.xlane.f32.xlu0 %v1496
  %v1498 = vpop.xlane.xlu0 %1497
  %v1499 = vrcp.pop %v1477
  %v1500 = vrcp.pop %v1480
  %v1501 = vrcp.pop %v1483
  %v1502 = vrcp.pop %v1486
  %v1503 = vrcp.pop %v1489
  %v1504 = vrcp.pop %v1492
  %v1505 = vrcp.pop %v1495
  %v1506 = vrcp.pop %v1498
  %v1507 = vmul.f32 %v1460, %v1499
  %v1508 = vmul.f32 %v1462, %v1500
  %v1509 = vmul.f32 %v1464, %v1501
  %v1510 = vmul.f32 %v1466, %v1502
  %v1511 = vmul.f32 %v1468, %v1503
  %v1512 = vmul.f32 %v1470, %v1504
  %v1513 = vmul.f32 %v1472, %v1505
  %v1514 = vmul.f32 %v1474, %v1506
  %v1516 = vsel %vm504, %v1507, 0
  %v1519 = vsel %vm504, %v1508, 0
  %v1522 = vsel %vm504, %v1509, 0
  %v1525 = vsel %vm504, %v1510, 0
  %1527 = vmatprep.subr.mxu0 0.0
  %1528 = vmatpush1.msra.mxu0 %v1094
  %1529 = vmatprep.subr.mxu0 0.0
  %1530 = vmatpush1.msra.mxu0 %v1099
  %1531 = vmatprep.subr.mxu0 0.0
  %1532 = vmatpush1.msra.mxu0 %v1104
  %1533 = vmatprep.subr.mxu0 0.0
  %1534 = vmatpush1.msra.mxu0 %v1109
  %1535 = vmatprep.subr.mxu0 0.0
  %1536 = vmatpush1.msra.mxu0 0.0
  %1537 = vmatprep.subr.mxu0 0.0
  %1538 = vmatpush1.msra.mxu0 0.0
  %1539 = vmatprep.subr.mxu0 0.0
  %1540 = vmatpush1.msra.mxu0 0.0
  %1541 = vmatprep.subr.mxu0 0.0
  %1542 = vmatpush1.msra.mxu0 0.0
  %1543 = vmatprep.subr.mxu0 0.0
  %1544 = vmatpush1.msra.mxu0 0.0
  %1545 = vmatprep.subr.mxu0 0.0
  %1546 = vmatpush1.msra.mxu0 0.0
  %1547 = vmatprep.subr.mxu0 0.0
  %1548 = vmatpush1.msra.mxu0 0.0
  %1549 = vmatprep.subr.mxu0 0.0
  %1550 = vmatpush1.msra.mxu0 0.0
  %1551 = vmatprep.subr.mxu0 0.0
  %1552 = vmatpush1.msra.mxu0 0.0
  %1553 = vmatprep.subr.mxu0 0.0
  %1554 = vmatpush1.msra.mxu0 0.0
  %1555 = vmatprep.subr.mxu0 0.0
  %1556 = vmatpush1.msra.mxu0 0.0
  %1557 = vmatprep.subr.mxu0 0.0
  %1558 = vmatpush1.msra.mxu0 0.0
  %1559 = vmatprep.subr.mxu0 0.0
  %1560 = vmatpush1.msra.mxu0 0.0
  %1561 = vmatprep.subr.mxu0 0.0
  %1562 = vmatpush1.msra.mxu0 0.0
  %1563 = vmatprep.subr.mxu0 0.0
  %1564 = vmatpush1.msra.mxu0 0.0
  %1565 = vmatprep.subr.mxu0 0.0
  %1566 = vmatpush1.msra.mxu0 0.0
  %1567 = vmatprep.subr.mxu0 0.0
  %1568 = vmatpush1.msra.mxu0 0.0
  %1569 = vmatprep.subr.mxu0 0.0
  %1570 = vmatpush1.msra.mxu0 0.0
  %1571 = vmatprep.subr.mxu0 0.0
  %1572 = vmatpush1.msra.mxu0 0.0
  %1573 = vmatprep.subr.mxu0 0.0
  %1574 = vmatpush1.msra.mxu0 0.0
  %1575 = vmatprep.subr.mxu0 0.0
  %1576 = vmatpush1.msra.mxu0 0.0
  %1577 = vmatprep.subr.mxu0 0.0
  %1578 = vmatpush1.msra.mxu0 0.0
  %1579 = vmatprep.subr.mxu0 0.0
  %1580 = vmatpush1.msra.mxu0 0.0
  %1581 = vmatprep.subr.mxu0 0.0
  %1582 = vmatpush1.msra.mxu0 0.0
  %1583 = vmatprep.subr.mxu0 0.0
  %1584 = vmatpush1.msra.mxu0 0.0
  %1585 = vmatprep.subr.mxu0 0.0
  %1586 = vmatpush1.msra.mxu0 0.0
  %1587 = vmatprep.subr.mxu0 0.0
  %1588 = vmatpush1.msra.mxu0 0.0
  %1589 = vmatprep.subr.mxu0 0.0
  %1590 = vmatpush1.msra.mxu0 0.0
  %1591 = vmatprep.mubr.f32.mxu0 0.0
  %1592 = vmatmul.mubr.f32.gmra.mrb[0].mxu0 %v1516
  %v1593 = vpop.f32.mrb[0].mxu0
  %v1594 = vadd.f32 0.0, %v1593
  %v1595 = vpop.f32.mrb[0].mxu0
  %1596 = vmatprep.mubr.f32.mxu0 0.0
  %1597 = vmatmul.mubr.f32.gmra.mrb[0].mxu0 %v1519
  %v1598 = vpop.f32.mrb[0].mxu0
  %v1599 = vadd.f32 0.0, %v1598
  %v1600 = vpop.f32.mrb[0].mxu0
  %1601 = vmatprep.mubr.f32.mxu0 0.0
  %1602 = vmatmul.mubr.f32.gmra.mrb[0].mxu0 %v1522
  %v1603 = vpop.f32.mrb[0].mxu0
  %v1604 = vadd.f32 0.0, %v1603
  %v1605 = vpop.f32.mrb[0].mxu0
  %1606 = vmatprep.mubr.f32.mxu0 0.0
  %1607 = vmatmul.mubr.f32.gmra.mrb[0].mxu0 %v1525
  %v1608 = vpop.f32.mrb[0].mxu0
  %v1609 = vadd.f32 0.0, %v1608
  %v1610 = vpop.f32.mrb[0].mxu0
  %1611 = vdwg.mxu0
  %v1613 = vsel %vm504, %v1511, 0
  %v1616 = vsel %vm504, %v1512, 0
  %v1619 = vsel %vm504, %v1513, 0
  %v1622 = vsel %vm504, %v1514, 0
  %1624 = vmatprep.subr.mxu0 0.0
  %1625 = vmatpush1.msra.mxu0 %v1179
  %1626 = vmatprep.subr.mxu0 0.0
  %1627 = vmatpush1.msra.mxu0 %v1184
  %1628 = vmatprep.subr.mxu0 0.0
  %1629 = vmatpush1.msra.mxu0 %v1189
  %1630 = vmatprep.subr.mxu0 0.0
  %1631 = vmatpush1.msra.mxu0 %v1194
  %1632 = vmatprep.subr.mxu0 0.0
  %1633 = vmatpush1.msra.mxu0 0.0
  %1634 = vmatprep.subr.mxu0 0.0
  %1635 = vmatpush1.msra.mxu0 0.0
  %1636 = vmatprep.subr.mxu0 0.0
  %1637 = vmatpush1.msra.mxu0 0.0
  %1638 = vmatprep.subr.mxu0 0.0
  %1639 = vmatpush1.msra.mxu0 0.0
  %1640 = vmatprep.subr.mxu0 0.0
  %1641 = vmatpush1.msra.mxu0 0.0
  %1642 = vmatprep.subr.mxu0 0.0
  %1643 = vmatpush1.msra.mxu0 0.0
  %1644 = vmatprep.subr.mxu0 0.0
  %1645 = vmatpush1.msra.mxu0 0.0
  %1646 = vmatprep.subr.mxu0 0.0
  %1647 = vmatpush1.msra.mxu0 0.0
  %1648 = vmatprep.subr.mxu0 0.0
  %1649 = vmatpush1.msra.mxu0 0.0
  %1650 = vmatprep.subr.mxu0 0.0
  %1651 = vmatpush1.msra.mxu0 0.0
  %1652 = vmatprep.subr.mxu0 0.0
  %1653 = vmatpush1.msra.mxu0 0.0
  %1654 = vmatprep.subr.mxu0 0.0
  %1655 = vmatpush1.msra.mxu0 0.0
  %1656 = vmatprep.subr.mxu0 0.0
  %1657 = vmatpush1.msra.mxu0 0.0
  %1658 = vmatprep.subr.mxu0 0.0
  %1659 = vmatpush1.msra.mxu0 0.0
  %1660 = vmatprep.subr.mxu0 0.0
  %1661 = vmatpush1.msra.mxu0 0.0
  %1662 = vmatprep.subr.mxu0 0.0
  %1663 = vmatpush1.msra.mxu0 0.0
  %1664 = vmatprep.subr.mxu0 0.0
  %1665 = vmatpush1.msra.mxu0 0.0
  %1666 = vmatprep.subr.mxu0 0.0
  %1667 = vmatpush1.msra.mxu0 0.0
  %1668 = vmatprep.subr.mxu0 0.0
  %1669 = vmatpush1.msra.mxu0 0.0
  %1670 = vmatprep.subr.mxu0 0.0
  %1671 = vmatpush1.msra.mxu0 0.0
  %1672 = vmatprep.subr.mxu0 0.0
  %1673 = vmatpush1.msra.mxu0 0.0
  %1674 = vmatprep.subr.mxu0 0.0
  %1675 = vmatpush1.msra.mxu0 0.0
  %1676 = vmatprep.subr.mxu0 0.0
  %1677 = vmatpush1.msra.mxu0 0.0
  %1678 = vmatprep.subr.mxu0 0.0
  %1679 = vmatpush1.msra.mxu0 0.0
  %1680 = vmatprep.subr.mxu0 0.0
  %1681 = vmatpush1.msra.mxu0 0.0
  %1682 = vmatprep.subr.mxu0 0.0
  %1683 = vmatpush1.msra.mxu0 0.0
  %1684 = vmatprep.subr.mxu0 0.0
  %1685 = vmatpush1.msra.mxu0 0.0
  %1686 = vmatprep.subr.mxu0 0.0
  %1687 = vmatpush1.msra.mxu0 0.0
  %1688 = vmatprep.mubr.f32.mxu0 0.0
  %1689 = vmatmul.mubr.f32.gmra.mrb[0].mxu0 %v1613
  %v1690 = vpop.f32.mrb[0].mxu0
  %v1691 = vadd.f32 0.0, %v1690
  %v1692 = vpop.f32.mrb[0].mxu0
  %1693 = vmatprep.mubr.f32.mxu0 0.0
  %1694 = vmatmul.mubr.f32.gmra.mrb[0].mxu0 %v1616
  %v1695 = vpop.f32.mrb[0].mxu0
  %v1696 = vadd.f32 0.0, %v1695
  %v1697 = vpop.f32.mrb[0].mxu0
  %1698 = vmatprep.mubr.f32.mxu0 0.0
  %1699 = vmatmul.mubr.f32.gmra.mrb[0].mxu0 %v1619
  %v1700 = vpop.f32.mrb[0].mxu0
  %v1701 = vadd.f32 0.0, %v1700
  %v1702 = vpop.f32.mrb[0].mxu0
  %1703 = vmatprep.mubr.f32.mxu0 0.0
  %1704 = vmatmul.mubr.f32.gmra.mrb[0].mxu0 %v1622
  %v1705 = vpop.f32.mrb[0].mxu0
  %v1706 = vadd.f32 0.0, %v1705
  %v1707 = vpop.f32.mrb[0].mxu0
  %1708 = vdwg.mxu0
  %v1710 = vsel %vm69, %v1594, 0
  %v1713 = vsel %vm69, %v1599, 0
  %v1716 = vsel %vm69, %v1604, 0
  %v1719 = vsel %vm69, %v1609, 0
  %1721 = vmatprep.subr.mxu0 0.0
  %1722 = vmatpush1.msra.mxu0 %v62
  %1723 = vmatprep.subr.mxu0 0.0
  %1724 = vmatpush1.msra.mxu0 0.0
  %1725 = vmatprep.subr.mxu0 0.0
  %1726 = vmatpush1.msra.mxu0 0.0
  %1727 = vmatprep.subr.mxu0 0.0
  %1728 = vmatpush1.msra.mxu0 0.0
  %1729 = vmatprep.subr.mxu0 0.0
  %1730 = vmatpush1.msra.mxu0 0.0
  %1731 = vmatprep.subr.mxu0 0.0
  %1732 = vmatpush1.msra.mxu0 0.0
  %1733 = vmatprep.subr.mxu0 0.0
  %1734 = vmatpush1.msra.mxu0 0.0
  %1735 = vmatprep.subr.mxu0 0.0
  %1736 = vmatpush1.msra.mxu0 0.0
  %1737 = vmatprep.subr.mxu0 0.0
  %1738 = vmatpush1.msra.mxu0 0.0
  %1739 = vmatprep.subr.mxu0 0.0
  %1740 = vmatpush1.msra.mxu0 0.0
  %1741 = vmatprep.subr.mxu0 0.0
  %1742 = vmatpush1.msra.mxu0 0.0
  %1743 = vmatprep.subr.mxu0 0.0
  %1744 = vmatpush1.msra.mxu0 0.0
  %1745 = vmatprep.subr.mxu0 0.0
  %1746 = vmatpush1.msra.mxu0 0.0
  %1747 = vmatprep.subr.mxu0 0.0
  %1748 = vmatpush1.msra.mxu0 0.0
  %1749 = vmatprep.subr.mxu0 0.0
  %1750 = vmatpush1.msra.mxu0 0.0
  %1751 = vmatprep.subr.mxu0 0.0
  %1752 = vmatpush1.msra.mxu0 0.0
  %1753 = vmatprep.subr.mxu0 0.0
  %1754 = vmatpush1.msra.mxu0 0.0
  %1755 = vmatprep.subr.mxu0 0.0
  %1756 = vmatpush1.msra.mxu0 0.0
  %1757 = vmatprep.subr.mxu0 0.0
  %1758 = vmatpush1.msra.mxu0 0.0
  %1759 = vmatprep.subr.mxu0 0.0
  %1760 = vmatpush1.msra.mxu0 0.0
  %1761 = vmatprep.subr.mxu0 0.0
  %1762 = vmatpush1.msra.mxu0 0.0
  %1763 = vmatprep.subr.mxu0 0.0
  %1764 = vmatpush1.msra.mxu0 0.0
  %1765 = vmatprep.subr.mxu0 0.0
  %1766 = vmatpush1.msra.mxu0 0.0
  %1767 = vmatprep.subr.mxu0 0.0
  %1768 = vmatpush1.msra.mxu0 0.0
  %1769 = vmatprep.subr.mxu0 0.0
  %1770 = vmatpush1.msra.mxu0 0.0
  %1771 = vmatprep.subr.mxu0 0.0
  %1772 = vmatpush1.msra.mxu0 0.0
  %1773 = vmatprep.subr.mxu0 0.0
  %1774 = vmatpush1.msra.mxu0 0.0
  %1775 = vmatprep.subr.mxu0 0.0
  %1776 = vmatpush1.msra.mxu0 0.0
  %1777 = vmatprep.subr.mxu0 0.0
  %1778 = vmatpush1.msra.mxu0 0.0
  %1779 = vmatprep.subr.mxu0 0.0
  %1780 = vmatpush1.msra.mxu0 0.0
  %1781 = vmatprep.subr.mxu0 0.0
  %1782 = vmatpush1.msra.mxu0 0.0
  %1783 = vmatprep.subr.mxu0 0.0
  %1784 = vmatpush1.msra.mxu0 0.0
  %1785 = vmatprep.mubr.f32.mxu0 0.0
  %1786 = vmatmul.mubr.f32.gmra.mrb[0].mxu0 %v1710
  %v1787 = vpop.f32.mrb[0].mxu0
  %v1788 = vadd.f32 0.0, %v1787
  %v1789 = vpop.f32.mrb[0].mxu0
  %1790 = vmatprep.mubr.f32.mxu0 0.0
  %1791 = vmatmul.mubr.f32.gmra.mrb[0].mxu0 %v1713
  %v1792 = vpop.f32.mrb[0].mxu0
  %v1793 = vadd.f32 0.0, %v1792
  %v1794 = vpop.f32.mrb[0].mxu0
  %1795 = vmatprep.mubr.f32.mxu0 0.0
  %1796 = vmatmul.mubr.f32.gmra.mrb[0].mxu0 %v1716
  %v1797 = vpop.f32.mrb[0].mxu0
  %v1798 = vadd.f32 0.0, %v1797
  %v1799 = vpop.f32.mrb[0].mxu0
  %1800 = vmatprep.mubr.f32.mxu0 0.0
  %1801 = vmatmul.mubr.f32.gmra.mrb[0].mxu0 %v1719
  %v1802 = vpop.f32.mrb[0].mxu0
  %v1803 = vadd.f32 0.0, %v1802
  %v1804 = vpop.f32.mrb[0].mxu0
  %1805 = vdwg.mxu0
  %v1807 = vsel %vm69, %v1691, 0
  %v1810 = vsel %vm69, %v1696, 0
  %v1813 = vsel %vm69, %v1701, 0
  %v1816 = vsel %vm69, %v1706, 0
  %1818 = vmatprep.subr.mxu0 0.0
  %1819 = vmatpush1.msra.mxu0 %v63
  %1820 = vmatprep.subr.mxu0 0.0
  %1821 = vmatpush1.msra.mxu0 0.0
  %1822 = vmatprep.subr.mxu0 0.0
  %1823 = vmatpush1.msra.mxu0 0.0
  %1824 = vmatprep.subr.mxu0 0.0
  %1825 = vmatpush1.msra.mxu0 0.0
  %1826 = vmatprep.subr.mxu0 0.0
  %1827 = vmatpush1.msra.mxu0 0.0
  %1828 = vmatprep.subr.mxu0 0.0
  %1829 = vmatpush1.msra.mxu0 0.0
  %1830 = vmatprep.subr.mxu0 0.0
  %1831 = vmatpush1.msra.mxu0 0.0
  %1832 = vmatprep.subr.mxu0 0.0
  %1833 = vmatpush1.msra.mxu0 0.0
  %1834 = vmatprep.subr.mxu0 0.0
  %1835 = vmatpush1.msra.mxu0 0.0
  %1836 = vmatprep.subr.mxu0 0.0
  %1837 = vmatpush1.msra.mxu0 0.0
  %1838 = vmatprep.subr.mxu0 0.0
  %1839 = vmatpush1.msra.mxu0 0.0
  %1840 = vmatprep.subr.mxu0 0.0
  %1841 = vmatpush1.msra.mxu0 0.0
  %1842 = vmatprep.subr.mxu0 0.0
  %1843 = vmatpush1.msra.mxu0 0.0
  %1844 = vmatprep.subr.mxu0 0.0
  %1845 = vmatpush1.msra.mxu0 0.0
  %1846 = vmatprep.subr.mxu0 0.0
  %1847 = vmatpush1.msra.mxu0 0.0
  %1848 = vmatprep.subr.mxu0 0.0
  %1849 = vmatpush1.msra.mxu0 0.0
  %1850 = vmatprep.subr.mxu0 0.0
  %1851 = vmatpush1.msra.mxu0 0.0
  %1852 = vmatprep.subr.mxu0 0.0
  %1853 = vmatpush1.msra.mxu0 0.0
  %1854 = vmatprep.subr.mxu0 0.0
  %1855 = vmatpush1.msra.mxu0 0.0
  %1856 = vmatprep.subr.mxu0 0.0
  %1857 = vmatpush1.msra.mxu0 0.0
  %1858 = vmatprep.subr.mxu0 0.0
  %1859 = vmatpush1.msra.mxu0 0.0
  %1860 = vmatprep.subr.mxu0 0.0
  %1861 = vmatpush1.msra.mxu0 0.0
  %1862 = vmatprep.subr.mxu0 0.0
  %1863 = vmatpush1.msra.mxu0 0.0
  %1864 = vmatprep.subr.mxu0 0.0
  %1865 = vmatpush1.msra.mxu0 0.0
  %1866 = vmatprep.subr.mxu0 0.0
  %1867 = vmatpush1.msra.mxu0 0.0
  %1868 = vmatprep.subr.mxu0 0.0
  %1869 = vmatpush1.msra.mxu0 0.0
  %1870 = vmatprep.subr.mxu0 0.0
  %1871 = vmatpush1.msra.mxu0 0.0
  %1872 = vmatprep.subr.mxu0 0.0
  %1873 = vmatpush1.msra.mxu0 0.0
  %1874 = vmatprep.subr.mxu0 0.0
  %1875 = vmatpush1.msra.mxu0 0.0
  %1876 = vmatprep.subr.mxu0 0.0
  %1877 = vmatpush1.msra.mxu0 0.0
  %1878 = vmatprep.subr.mxu0 0.0
  %1879 = vmatpush1.msra.mxu0 0.0
  %1880 = vmatprep.subr.mxu0 0.0
  %1881 = vmatpush1.msra.mxu0 0.0
  %1882 = vmatprep.mubr.f32.mxu0 0.0
  %1883 = vmatmul.mubr.f32.gmra.mrb[0].mxu0 %v1807
  %v1884 = vpop.f32.mrb[0].mxu0
  %v1885 = vadd.f32 0.0, %v1884
  %v1886 = vpop.f32.mrb[0].mxu0
  %1887 = vmatprep.mubr.f32.mxu0 0.0
  %1888 = vmatmul.mubr.f32.gmra.mrb[0].mxu0 %v1810
  %v1889 = vpop.f32.mrb[0].mxu0
  %v1890 = vadd.f32 0.0, %v1889
  %v1891 = vpop.f32.mrb[0].mxu0
  %1892 = vmatprep.mubr.f32.mxu0 0.0
  %1893 = vmatmul.mubr.f32.gmra.mrb[0].mxu0 %v1813
  %v1894 = vpop.f32.mrb[0].mxu0
  %v1895 = vadd.f32 0.0, %v1894
  %v1896 = vpop.f32.mrb[0].mxu0
  %1897 = vmatprep.mubr.f32.mxu0 0.0
  %1898 = vmatmul.mubr.f32.gmra.mrb[0].mxu0 %v1816
  %v1899 = vpop.f32.mrb[0].mxu0
  %v1900 = vadd.f32 0.0, %v1899
  %v1901 = vpop.f32.mrb[0].mxu0
  %1902 = vdwg.mxu0
  %v1903 = vsel %vm981, %v1788, 0.0
  %v1904 = vsel %vm981, %v1885, 0.0
  %v1905 = vadd.f32 %v1903, %v1904
  %v1906 = vsel %vm981, %v1793, 0.0
  %v1907 = vsel %vm981, %v1890, 0.0
  %v1908 = vadd.f32 %v1906, %v1907
  %v1909 = vsel %vm981, %v1798, 0.0
  %v1910 = vsel %vm981, %v1895, 0.0
  %v1911 = vadd.f32 %v1909, %v1910
  %v1912 = vsel %vm981, %v1803, 0.0
  %v1913 = vsel %vm981, %v1900, 0.0
  %v1914 = vadd.f32 %v1912, %v1913
  %v1916 = vlaneseq
  %v1917 = vshrl.u32 %v1916, 7
  %v1918 = vsub.s32 0, %v1917
  %v1919 = vrot.slane %v1014, %v1918
  %v1921 = vadd.f32 %v1905, %v1919
  %v1922 = vadd.f32 %v1908, %v1919
  %v1923 = vadd.f32 %v1911, %v1919
  %v1924 = vadd.f32 %v1914, %v1919
  %v1925 = vmax.f32 %v1921, 0.0
  %v1926 = vmax.f32 %v1922, 0.0
  %v1927 = vmax.f32 %v1923, 0.0
  %v1928 = vmax.f32 %v1924, 0.0
  %v1929 = vld [vmem:[%s11] sm:$0xff]
  %v1930 = vld [vmem:[%s11 + $0x8] sm:$0xff]
  %v1931 = vld [vmem:[%s12] sm:$0x1]
  %v1933 = vlaneseq
  %v1934 = vshrl.u32 %v1933, 7
  %v1935 = vsub.s32 0, %v1934
  %v1936 = vrot.slane %v1931, %v1935
  %v1939 = vsel %vm981, %v1925, 0
  %v1942 = vsel %vm981, %v1926, 0
  %v1945 = vsel %vm981, %v1927, 0
  %v1948 = vsel %vm981, %v1928, 0
  %1950 = vmatprep.subr.mxu0 0.0
  %1951 = vmatpush1.msra.mxu0 %v1929
  %1952 = vmatprep.subr.mxu0 0.0
  %1953 = vmatpush1.msra.mxu0 %v1930
  %1954 = vmatprep.subr.mxu0 0.0
  %1955 = vmatpush1.msra.mxu0 0.0
  %1956 = vmatprep.subr.mxu0 0.0
  %1957 = vmatpush1.msra.mxu0 0.0
  %1958 = vmatprep.subr.mxu0 0.0
  %1959 = vmatpush1.msra.mxu0 0.0
  %1960 = vmatprep.subr.mxu0 0.0
  %1961 = vmatpush1.msra.mxu0 0.0
  %1962 = vmatprep.subr.mxu0 0.0
  %1963 = vmatpush1.msra.mxu0 0.0
  %1964 = vmatprep.subr.mxu0 0.0
  %1965 = vmatpush1.msra.mxu0 0.0
  %1966 = vmatprep.subr.mxu0 0.0
  %1967 = vmatpush1.msra.mxu0 0.0
  %1968 = vmatprep.subr.mxu0 0.0
  %1969 = vmatpush1.msra.mxu0 0.0
  %1970 = vmatprep.subr.mxu0 0.0
  %1971 = vmatpush1.msra.mxu0 0.0
  %1972 = vmatprep.subr.mxu0 0.0
  %1973 = vmatpush1.msra.mxu0 0.0
  %1974 = vmatprep.subr.mxu0 0.0
  %1975 = vmatpush1.msra.mxu0 0.0
  %1976 = vmatprep.subr.mxu0 0.0
  %1977 = vmatpush1.msra.mxu0 0.0
  %1978 = vmatprep.subr.mxu0 0.0
  %1979 = vmatpush1.msra.mxu0 0.0
  %1980 = vmatprep.subr.mxu0 0.0
  %1981 = vmatpush1.msra.mxu0 0.0
  %1982 = vmatprep.subr.mxu0 0.0
  %1983 = vmatpush1.msra.mxu0 0.0
  %1984 = vmatprep.subr.mxu0 0.0
  %1985 = vmatpush1.msra.mxu0 0.0
  %1986 = vmatprep.subr.mxu0 0.0
  %1987 = vmatpush1.msra.mxu0 0.0
  %1988 = vmatprep.subr.mxu0 0.0
  %1989 = vmatpush1.msra.mxu0 0.0
  %1990 = vmatprep.subr.mxu0 0.0
  %1991 = vmatpush1.msra.mxu0 0.0
  %1992 = vmatprep.subr.mxu0 0.0
  %1993 = vmatpush1.msra.mxu0 0.0
  %1994 = vmatprep.subr.mxu0 0.0
  %1995 = vmatpush1.msra.mxu0 0.0
  %1996 = vmatprep.subr.mxu0 0.0
  %1997 = vmatpush1.msra.mxu0 0.0
  %1998 = vmatprep.subr.mxu0 0.0
  %1999 = vmatpush1.msra.mxu0 0.0
  %2000 = vmatprep.subr.mxu0 0.0
  %2001 = vmatpush1.msra.mxu0 0.0
  %2002 = vmatprep.subr.mxu0 0.0
  %2003 = vmatpush1.msra.mxu0 0.0
  %2004 = vmatprep.subr.mxu0 0.0
  %2005 = vmatpush1.msra.mxu0 0.0
  %2006 = vmatprep.subr.mxu0 0.0
  %2007 = vmatpush1.msra.mxu0 0.0
  %2008 = vmatprep.subr.mxu0 0.0
  %2009 = vmatpush1.msra.mxu0 0.0
  %2010 = vmatprep.subr.mxu0 0.0
  %2011 = vmatpush1.msra.mxu0 0.0
  %2012 = vmatprep.subr.mxu0 0.0
  %2013 = vmatpush1.msra.mxu0 0.0
  %2014 = vmatprep.mubr.f32.mxu0 0.0
  %2015 = vmatmul.mubr.f32.gmra.mrb[0].mxu0 %v1939
  %v2016 = vpop.f32.mrb[0].mxu0
  %v2017 = vadd.f32 %v1936, %v2016
  %v2018 = vpop.f32.mrb[0].mxu0
  %2019 = vmatprep.mubr.f32.mxu0 0.0
  %2020 = vmatmul.mubr.f32.gmra.mrb[0].mxu0 %v1942
  %v2021 = vpop.f32.mrb[0].mxu0
  %v2022 = vadd.f32 %v1936, %v2021
  %v2023 = vpop.f32.mrb[0].mxu0
  %2024 = vmatprep.mubr.f32.mxu0 0.0
  %2025 = vmatmul.mubr.f32.gmra.mrb[0].mxu0 %v1945
  %v2026 = vpop.f32.mrb[0].mxu0
  %v2027 = vadd.f32 %v1936, %v2026
  %v2028 = vpop.f32.mrb[0].mxu0
  %2029 = vmatprep.mubr.f32.mxu0 0.0
  %2030 = vmatmul.mubr.f32.gmra.mrb[0].mxu0 %v1948
  %v2031 = vpop.f32.mrb[0].mxu0
  %v2032 = vadd.f32 %v1936, %v2031
  %v2033 = vpop.f32.mrb[0].mxu0
  %2034 = vdwg.mxu0
  %v2035 = vmax.f32 %v2017, 0.0
  %v2036 = vmax.f32 %v2022, 0.0
  %v2037 = vmax.f32 %v2027, 0.0
  %v2038 = vmax.f32 %v2032, 0.0
  %v2039 = vld [vmem:[%s13] sm:$0xff]
  %v2040 = vld [vmem:[%s13 + $0x8] sm:$0xff]
  %v2041 = vld [vmem:[%s14] sm:$0x1]
  %v2043 = vlaneseq
  %v2044 = vshrl.u32 %v2043, 7
  %v2045 = vsub.s32 0, %v2044
  %v2046 = vrot.slane %v2041, %v2045
  %v2049 = vsel %vm981, %v2035, 0
  %v2052 = vsel %vm981, %v2036, 0
  %v2055 = vsel %vm981, %v2037, 0
  %v2058 = vsel %vm981, %v2038, 0
  %2060 = vmatprep.subr.mxu0 0.0
  %2061 = vmatpush1.msra.mxu0 %v2039
  %2062 = vmatprep.subr.mxu0 0.0
  %2063 = vmatpush1.msra.mxu0 %v2040
  %2064 = vmatprep.subr.mxu0 0.0
  %2065 = vmatpush1.msra.mxu0 0.0
  %2066 = vmatprep.subr.mxu0 0.0
  %2067 = vmatpush1.msra.mxu0 0.0
  %2068 = vmatprep.subr.mxu0 0.0
  %2069 = vmatpush1.msra.mxu0 0.0
  %2070 = vmatprep.subr.mxu0 0.0
  %2071 = vmatpush1.msra.mxu0 0.0
  %2072 = vmatprep.subr.mxu0 0.0
  %2073 = vmatpush1.msra.mxu0 0.0
  %2074 = vmatprep.subr.mxu0 0.0
  %2075 = vmatpush1.msra.mxu0 0.0
  %2076 = vmatprep.subr.mxu0 0.0
  %2077 = vmatpush1.msra.mxu0 0.0
  %2078 = vmatprep.subr.mxu0 0.0
  %2079 = vmatpush1.msra.mxu0 0.0
  %2080 = vmatprep.subr.mxu0 0.0
  %2081 = vmatpush1.msra.mxu0 0.0
  %2082 = vmatprep.subr.mxu0 0.0
  %2083 = vmatpush1.msra.mxu0 0.0
  %2084 = vmatprep.subr.mxu0 0.0
  %2085 = vmatpush1.msra.mxu0 0.0
  %2086 = vmatprep.subr.mxu0 0.0
  %2087 = vmatpush1.msra.mxu0 0.0
  %2088 = vmatprep.subr.mxu0 0.0
  %2089 = vmatpush1.msra.mxu0 0.0
  %2090 = vmatprep.subr.mxu0 0.0
  %2091 = vmatpush1.msra.mxu0 0.0
  %2092 = vmatprep.subr.mxu0 0.0
  %2093 = vmatpush1.msra.mxu0 0.0
  %2094 = vmatprep.subr.mxu0 0.0
  %2095 = vmatpush1.msra.mxu0 0.0
  %2096 = vmatprep.subr.mxu0 0.0
  %2097 = vmatpush1.msra.mxu0 0.0
  %2098 = vmatprep.subr.mxu0 0.0
  %2099 = vmatpush1.msra.mxu0 0.0
  %2100 = vmatprep.subr.mxu0 0.0
  %2101 = vmatpush1.msra.mxu0 0.0
  %2102 = vmatprep.subr.mxu0 0.0
  %2103 = vmatpush1.msra.mxu0 0.0
  %2104 = vmatprep.subr.mxu0 0.0
  %2105 = vmatpush1.msra.mxu0 0.0
  %2106 = vmatprep.subr.mxu0 0.0
  %2107 = vmatpush1.msra.mxu0 0.0
  %2108 = vmatprep.subr.mxu0 0.0
  %2109 = vmatpush1.msra.mxu0 0.0
  %2110 = vmatprep.subr.mxu0 0.0
  %2111 = vmatpush1.msra.mxu0 0.0
  %2112 = vmatprep.subr.mxu0 0.0
  %2113 = vmatpush1.msra.mxu0 0.0
  %2114 = vmatprep.subr.mxu0 0.0
  %2115 = vmatpush1.msra.mxu0 0.0
  %2116 = vmatprep.subr.mxu0 0.0
  %2117 = vmatpush1.msra.mxu0 0.0
  %2118 = vmatprep.subr.mxu0 0.0
  %2119 = vmatpush1.msra.mxu0 0.0
  %2120 = vmatprep.subr.mxu0 0.0
  %2121 = vmatpush1.msra.mxu0 0.0
  %2122 = vmatprep.subr.mxu0 0.0
  %2123 = vmatpush1.msra.mxu0 0.0
  %2124 = vmatprep.mubr.f32.mxu0 0.0
  %2125 = vmatmul.mubr.f32.gmra.mrb[0].mxu0 %v2049
  %v2126 = vpop.f32.mrb[0].mxu0
  %v2127 = vadd.f32 %v2046, %v2126
  %v2128 = vpop.f32.mrb[0].mxu0
  %2129 = vmatprep.mubr.f32.mxu0 0.0
  %2130 = vmatmul.mubr.f32.gmra.mrb[0].mxu0 %v2052
  %v2131 = vpop.f32.mrb[0].mxu0
  %v2132 = vadd.f32 %v2046, %v2131
  %v2133 = vpop.f32.mrb[0].mxu0
  %2134 = vmatprep.mubr.f32.mxu0 0.0
  %2135 = vmatmul.mubr.f32.gmra.mrb[0].mxu0 %v2055
  %v2136 = vpop.f32.mrb[0].mxu0
  %v2137 = vadd.f32 %v2046, %v2136
  %v2138 = vpop.f32.mrb[0].mxu0
  %2139 = vmatprep.mubr.f32.mxu0 0.0
  %2140 = vmatmul.mubr.f32.gmra.mrb[0].mxu0 %v2058
  %v2141 = vpop.f32.mrb[0].mxu0
  %v2142 = vadd.f32 %v2046, %v2141
  %v2143 = vpop.f32.mrb[0].mxu0
  %2144 = vdwg.mxu0
  %vm2145 = vcmask 31744
  %2146 = vst.msk [vmem:[%s15] sm:$0xff] %vm2145, %v2127
  %2147 = vst.msk [vmem:[%s15 + $0x8] sm:$0xff] %vm2145, %v2132
  %2148 = vst.msk [vmem:[%s15 + $0x10] sm:$0xff] %vm2145, %v2137
  %2149 = vst.msk [vmem:[%s15 + $0x18] sm:$0xff] %vm2145, %v2142
  // Predicated region
  $region62: #{tpu_custom_call.1} parent=0 // pred_check
    _
  $region63: #{tpu_custom_call.1} parent=0 // pred_check_branch
    %2151 = sbr.rel (0) target = $region65
  $region64: #{tpu_custom_call.1} parent=0 // pred_region
    _
  $region65: #{tpu_custom_call.1} parent=0 // pred_fallthru
    _
  // Predicated region
  $region66: #{tpu_custom_call.1} parent=0 // pred_check
    _
  $region67: #{tpu_custom_call.1} parent=0 // pred_check_branch
    %2153 = sbr.rel (0) target = $region69
  $region68: #{tpu_custom_call.1} parent=0 // pred_region
    _
  $region69: #{tpu_custom_call.1} parent=0 // pred_fallthru
    _

</llo_original>
